<compile_context>
chip_gen: v5e
topology: v5e:2x2
jax: 0.10.0
libtpu: 0.0.40
codegen_flags: <defaults>
</compile_context>

<pallas_src>
import jax
import jax.numpy as jnp
from jax import lax
from jax.experimental import pallas as pl
from jax.experimental.pallas import tpu as pltpu

CROP = 16              # fixed crop size produced by the transform
CIN = 3                # RGB
COUT = 128             # conv channels (lane-dense)
NUM_CLASSES = 8
OUT_PAD = 128          # logits padded to a full lane width for unmasked stores
K = 3 * 3 * CIN        # im2col depth = 27
KP = 32                # K zero-padded to the bf16 sublane tile
HW = CROP * CROP       # 256
B_MAX = 64             # max crops per grid step (fused kernel keeps VMEM tiny)


def _cdiv(a, b):
    return -(-a // b)


_MULTI_TC = None


def _is_multi_tc_chip():
    """True on chips with 2 TensorCores (v7x); v5e/v6e are single-TC."""
    global _MULTI_TC
    if _MULTI_TC is None:
        try:
            _MULTI_TC = "v7" in jax.devices()[0].device_kind.lower()
        except Exception:
            _MULTI_TC = False
    return _MULTI_TC


# ----------------------------------------------------------------------------
# Pallas kernel: b crops per grid step (batched model forward, fused pool)
# ----------------------------------------------------------------------------
def _model_kernel(patches_ref, wconv_ref, bconv_ref, whead_ref, bhead_ref,
                  out_ref, acc_ref):
    b = patches_ref.shape[0]
    wconv = wconv_ref[...]          # (KP, COUT) bf16, resident across the loop
    bconv = bconv_ref[...]          # (1, COUT) f32

    def body(i, carry):
        pi = patches_ref[i]         # (KP, HW) bf16 — one crop's im2col matrix
        # Conv as an im2col matmul; contracting dim 0 of both operands avoids
        # any wrapper-side data transpose (Mosaic feeds the MXU directly).
        f = lax.dot_general(pi, wconv, (((0,), (0,)), ((), ())),
                            preferred_element_type=jnp.float32)   # (HW, COUT) f32
        f = jnp.maximum(f + bconv, 0.0)                           # bias + ReLU (VPU, f32)
        # Global sum-pool (1/HW folded into the head weight).  The (HW, COUT)
        # tile is consumed immediately, so no batch-wide feat round-trips VMEM.
        acc_ref[pl.ds(i, 1), :] = jnp.sum(f, axis=0, keepdims=True)
        return carry

    lax.fori_loop(0, b, body, 0, unroll=(b <= 8))

    # Linear head on the MXU (bf16 inputs, f32 accumulation), lane-dense store.
    pooled = acc_ref[...].astype(jnp.bfloat16)                    # (b, COUT)
    out_ref[...] = jnp.dot(pooled, whead_ref[...],
                           preferred_element_type=jnp.float32) + bhead_ref[...]


def model_forward(patches, wconv, bconv, whead, bhead):
    """patches: (N, KP, HW) bf16 -> logits (N, NUM_CLASSES) f32."""
    n = patches.shape[0]
    steps = _cdiv(n, B_MAX)
    # Only split across the two v7x TensorCores when each core gets >= 8 real
    # crops; on single-TC v5e/v6e never force an extra (padded) grid step.
    if steps == 1 and n >= 16 and _is_multi_tc_chip():
        steps = 2
    b = max(8, _cdiv(_cdiv(n, steps), 8) * 8)      # multiple of 8 sublanes
    n_pad = steps * b
    if n_pad > n:
        patches = jnp.pad(patches, ((0, n_pad - n), (0, 0), (0, 0)))

    # Kernel-layout params: conv weight zero-padded K 27->KP=32 rows (bf16),
    # head padded to 128 lanes with the 1/HW pooling scale folded in, biases f32.
    wconv_pad = jnp.zeros((KP, COUT), jnp.bfloat16)
    wconv_pad = wconv_pad.at[:K, :].set(wconv.astype(jnp.bfloat16))
    whead_pad = jnp.zeros((COUT, OUT_PAD), jnp.bfloat16)
    whead_pad = whead_pad.at[:, :NUM_CLASSES].set(
        (whead * (1.0 / HW)).astype(jnp.bfloat16))
    bhead_pad = jnp.zeros((1, OUT_PAD), jnp.float32)
    bhead_pad = bhead_pad.at[:, :NUM_CLASSES].set(bhead)

    out = pl.pallas_call(
        _model_kernel,
        out_shape=jax.ShapeDtypeStruct((n_pad, OUT_PAD), jnp.float32),
        grid_spec=pltpu.PrefetchScalarGridSpec(
            num_scalar_prefetch=0,
            grid=(steps,),
            in_specs=[
                pl.BlockSpec((b, KP, HW), lambda i: (i, 0, 0)),      # b crops (lane-dense HW)
                pl.BlockSpec((KP, COUT), lambda i: (0, 0)),          # conv weight (resident)
                pl.BlockSpec((1, COUT), lambda i: (0, 0)),           # conv bias (f32)
                pl.BlockSpec((COUT, OUT_PAD), lambda i: (0, 0)),     # head weight (padded bf16)
                pl.BlockSpec((1, OUT_PAD), lambda i: (0, 0)),        # head bias (padded f32)
            ],
            out_specs=pl.BlockSpec((b, OUT_PAD), lambda i: (i, 0)),  # lane-dense logits block
            scratch_shapes=[pltpu.VMEM((b, COUT), jnp.float32)],     # pooled features
        ),
        compiler_params=pltpu.CompilerParams(dimension_semantics=("parallel",)),
    )(patches, wconv_pad, bconv, whead_pad, bhead_pad)
    return out[:n, :NUM_CLASSES]


# ----------------------------------------------------------------------------
# Glue: transform (PIL.crop + ToTensor + Normalize equivalent) and im2col
# ----------------------------------------------------------------------------
def transform(crop_u8):
    """uint8 (CROP, CROP, 3) -> normalized float32 (CROP, CROP, 3)."""
    x = crop_u8.astype(jnp.float32) * (1.0 / 255.0)
    return (x - 0.5) * 2.0


def im2col_kp_hw(crop):
    """(CROP, CROP, CIN) -> (KP, HW) bf16, 3x3 window, zero pad=1, (kh,kw,cin) K order."""
    pad = jnp.pad(crop, ((1, 1), (1, 1), (0, 0)))
    cols = []
    for kh in range(3):
        for kw in range(3):
            tap = pad[kh:kh + CROP, kw:kw + CROP, :]        # (CROP, CROP, CIN)
            cols.append(jnp.transpose(tap, (2, 0, 1)))      # (CIN, CROP, CROP)
    pt = jnp.stack(cols, axis=0).reshape(K, HW)             # (27, 256), k=(kh,kw,cin)
    pt = jnp.pad(pt, ((0, KP - K), (0, 0)))                 # (32, 256)
    return pt.astype(jnp.bfloat16)


def init_params(key):
    k1, k2, k3, k4 = jax.random.split(key, 4)
    wconv = jax.random.normal(k1, (K, COUT), jnp.float32) * (1.0 / jnp.sqrt(K))
    bconv = jax.random.normal(k2, (1, COUT), jnp.float32) * 0.01
    whead = jax.random.normal(k3, (COUT, NUM_CLASSES), jnp.float32) * (1.0 / jnp.sqrt(COUT))
    bhead = jax.random.normal(k4, (1, NUM_CLASSES), jnp.float32) * 0.01
    return wconv, bconv, whead, bhead


def extract_patches(frame_u8, lefts, tops):
    """Vectorized frame.crop + transform + im2col over all boxes -> (N, KP, HW) bf16."""
    # TODO(synk): lax.dynamic_slice clamps start indices, so boxes past the frame
    # edge shift instead of zero-padding like PIL crop.
    def one(left, top):
        crop = lax.dynamic_slice(frame_u8, (top, left, 0), (CROP, CROP, CIN))
        return im2col_kp_hw(transform(crop))
    return jax.vmap(one)(lefts, tops)


@jax.jit
def _annotate_jit(frame_u8, lefts, tops, wconv, bconv, whead, bhead):
    # transform + im2col + bf16 cast + param padding fused into one XLA program
    # that feeds pallas_call directly (no eager f32 patches array in HBM).
    patches = extract_patches(frame_u8, lefts, tops)
    predictions = model_forward(patches, wconv, bconv, whead, bhead)
    labels = jnp.argmax(predictions, axis=-1)
    return predictions, labels


def annotator_forward(frame_u8, boxes, params):
    """Annotator.forward: crop each object's box, run the model on the stacked
    crops, attach labels, and return (frame, predictions, labels)."""
    if len(boxes) == 0:
        # TODO(synk): reference falls back to the full-frame box (0,0,W,H); the
        # transform here has no resize so we use a fixed CROPxCROP crop at (0,0).
        boxes = [(0, 0)]
    lefts = jnp.array([b[0] for b in boxes], jnp.int32)
    tops = jnp.array([b[1] for b in boxes], jnp.int32)
    predictions, labels = _annotate_jit(frame_u8, lefts, tops, *params)
    # TODO(synk): Annotator.add_labels is abstract (NotImplementedError); argmax
    # of the predictions is used as a concrete stand-in labeling.
    return frame_u8, predictions, labels


# ----------------------------------------------------------------------------
# Reference (pure JAX, mirrors the kernel's bf16 MXU inputs / f32 accumulation)
# ----------------------------------------------------------------------------
def _ref_model(patches_kp_hw, wconv, bconv, whead, bhead):
    p = jnp.transpose(patches_kp_hw[:, :K, :], (0, 2, 1))                 # (N, HW, K) bf16
    feat = lax.dot_general(p, wconv.astype(jnp.bfloat16), (((2,), (0,)), ((), ())),
                           preferred_element_type=jnp.float32)            # (N, HW, COUT)
    feat = jnp.maximum(feat + bconv, 0.0)
    pooled = feat.mean(axis=1)                                            # (N, COUT)
    return jnp.dot(pooled.astype(jnp.bfloat16), whead.astype(jnp.bfloat16),
                   preferred_element_type=jnp.float32) + bhead            # (N, NUM_CLASSES)


if __name__ == "__main__":
    key = jax.random.PRNGKey(0)
    kf, kp, kf2 = jax.random.split(key, 3)
    params = init_params(kp)

    # Case 1: typical small-N tracking frame (2 boxes) -> single grid step, b=8.
    frame = jax.random.randint(kf, (32, 32, 3), 0, 256, dtype=jnp.uint8)
    boxes = [(0, 0), (8, 8)]
    frame_out, preds, labels = annotator_forward(frame, boxes, params)
    preds = jax.block_until_ready(preds)
    labels = jax.block_until_ready(labels)

    lefts = jnp.array([b[0] for b in boxes], jnp.int32)
    tops = jnp.array([b[1] for b in boxes], jnp.int32)
    ref = _ref_model(extract_patches(frame, lefts, tops), *params)
    assert preds.shape == (len(boxes), NUM_CLASSES)
    assert labels.shape == (len(boxes),)
    assert jnp.allclose(preds, ref, atol=5e-3, rtol=5e-3), (preds, ref)

    # Case 2: more tracked objects (exercises padding + non-unrolled crop loop).
    frame2 = jax.random.randint(kf2, (64, 64, 3), 0, 256, dtype=jnp.uint8)
    boxes2 = [(4 * i, 3 * i) for i in range(10)]
    _, preds2, _ = annotator_forward(frame2, boxes2, params)
    preds2 = jax.block_until_ready(preds2)
    lefts2 = jnp.array([b[0] for b in boxes2], jnp.int32)
    tops2 = jnp.array([b[1] for b in boxes2], jnp.int32)
    ref2 = _ref_model(extract_patches(frame2, lefts2, tops2), *params)
    assert preds2.shape == (len(boxes2), NUM_CLASSES)
    assert jnp.allclose(preds2, ref2, atol=5e-3, rtol=5e-3), (preds2, ref2)

    print("KERNEL_OK")
</pallas_src>

<mosaic_0001>
module attributes {stable_mosaic.version = 11 : i64} {
  func.func @_model_kernel(%arg0: i32, %arg1: memref<8x32x256xbf16, #tpu.memory_space<vmem>>, %arg2: memref<32x128xbf16, #tpu.memory_space<vmem>>, %arg3: memref<1x128xf32, #tpu.memory_space<vmem>>, %arg4: memref<128x128xbf16, #tpu.memory_space<vmem>>, %arg5: memref<1x128xf32, #tpu.memory_space<vmem>>, %arg6: memref<8x128xf32, #tpu.memory_space<vmem>>, %arg7: memref<8x128xf32, #tpu.memory_space<vmem>>) attributes {dimension_semantics = [#tpu.dimension_semantics<parallel>], iteration_bounds = array<i64: 1>, scalar_prefetch = 0 : i64, scratch_operands = 1 : i64, tpu.core_type = #tpu.core_type<tc>, window_params = [{transform_indices = @transform_0, window_bounds = array<i64: 8, 32, 256>}, {pipeline_mode = #tpu.pipeline_mode<synchronous>, transform_indices = @transform_1, window_bounds = array<i64: 32, 128>}, {pipeline_mode = #tpu.pipeline_mode<synchronous>, transform_indices = @transform_2, window_bounds = array<i64: 1, 128>}, {pipeline_mode = #tpu.pipeline_mode<synchronous>, transform_indices = @transform_3, window_bounds = array<i64: 128, 128>}, {pipeline_mode = #tpu.pipeline_mode<synchronous>, transform_indices = @transform_4, window_bounds = array<i64: 1, 128>}, {transform_indices = @transform_5, window_bounds = array<i64: 8, 128>}]} {
    %c0 = arith.constant 0 : index
    %c0_0 = arith.constant 0 : index
    %0 = vector.load %arg2[%c0, %c0_0] : memref<32x128xbf16, #tpu.memory_space<vmem>>, vector<32x128xbf16>
    %c0_1 = arith.constant 0 : index
    %c0_2 = arith.constant 0 : index
    %1 = vector.load %arg3[%c0_1, %c0_2] : memref<1x128xf32, #tpu.memory_space<vmem>>, vector<1x128xf32>
    %c0_i32 = arith.constant 0 : i32
    %2 = arith.index_cast %c0_i32 : i32 to index
    %c0_3 = arith.constant 0 : index
    %c0_4 = arith.constant 0 : index
    %3 = vector.load %arg1[%2, %c0_3, %c0_4] : memref<8x32x256xbf16, #tpu.memory_space<vmem>>, vector<1x32x256xbf16>
    %4 = vector.shape_cast %3 : vector<1x32x256xbf16> to vector<32x256xbf16>
    %cst = arith.constant dense<0.000000e+00> : vector<256x128xf32>
    %5 = tpu.matmul %4, %0, %cst {dimension_numbers = #tpu.dot_dimension_numbers<[0], [0], [1], [1], [0, 1, 1, 1], [], []>} : vector<32x256xbf16>, vector<32x128xbf16>, vector<256x128xf32> -> vector<256x128xf32>
    %6 = vector.broadcast %1 : vector<1x128xf32> to vector<256x128xf32>
    %7 = arith.addf %5, %6 : vector<256x128xf32>
    %cst_5 = arith.constant 0.000000e+00 : f32
    %8 = vector.broadcast %cst_5 : f32 to vector<256x128xf32>
    %9 = arith.maximumf %7, %8 : vector<256x128xf32>
    %cst_6 = arith.constant dense<0.000000e+00> : vector<128xf32>
    %10 = vector.multi_reduction <add>, %9, %cst_6 [0] : vector<256x128xf32> to vector<128xf32>
    %11 = vector.shape_cast %10 : vector<128xf32> to vector<1x128xf32>
    %12 = arith.index_cast %c0_i32 : i32 to index
    %c0_7 = arith.constant 0 : index
    %13 = vector.load %arg7[%12, %c0_7] : memref<8x128xf32, #tpu.memory_space<vmem>>, vector<1x128xf32>
    tpu.vector_store %arg7[%12, %c0_7], %11 {strides = array<i32>} : memref<8x128xf32, #tpu.memory_space<vmem>>, vector<1x128xf32>,
    %c1_i32 = arith.constant 1 : i32
    %14 = arith.index_cast %c1_i32 : i32 to index
    %c0_8 = arith.constant 0 : index
    %c0_9 = arith.constant 0 : index
    %15 = vector.load %arg1[%14, %c0_8, %c0_9] : memref<8x32x256xbf16, #tpu.memory_space<vmem>>, vector<1x32x256xbf16>
    %16 = vector.shape_cast %15 : vector<1x32x256xbf16> to vector<32x256xbf16>
    %cst_10 = arith.constant dense<0.000000e+00> : vector<256x128xf32>
    %17 = tpu.matmul %16, %0, %cst_10 {dimension_numbers = #tpu.dot_dimension_numbers<[0], [0], [1], [1], [0, 1, 1, 1], [], []>} : vector<32x256xbf16>, vector<32x128xbf16>, vector<256x128xf32> -> vector<256x128xf32>
    %18 = vector.broadcast %1 : vector<1x128xf32> to vector<256x128xf32>
    %19 = arith.addf %17, %18 : vector<256x128xf32>
    %cst_11 = arith.constant 0.000000e+00 : f32
    %20 = vector.broadcast %cst_11 : f32 to vector<256x128xf32>
    %21 = arith.maximumf %19, %20 : vector<256x128xf32>
    %cst_12 = arith.constant dense<0.000000e+00> : vector<128xf32>
    %22 = vector.multi_reduction <add>, %21, %cst_12 [0] : vector<256x128xf32> to vector<128xf32>
    %23 = vector.shape_cast %22 : vector<128xf32> to vector<1x128xf32>
    %24 = arith.index_cast %c1_i32 : i32 to index
    %c0_13 = arith.constant 0 : index
    %25 = vector.load %arg7[%24, %c0_13] : memref<8x128xf32, #tpu.memory_space<vmem>>, vector<1x128xf32>
    tpu.vector_store %arg7[%24, %c0_13], %23 {strides = array<i32>} : memref<8x128xf32, #tpu.memory_space<vmem>>, vector<1x128xf32>,
    %c2_i32 = arith.constant 2 : i32
    %26 = arith.index_cast %c2_i32 : i32 to index
    %c0_14 = arith.constant 0 : index
    %c0_15 = arith.constant 0 : index
    %27 = vector.load %arg1[%26, %c0_14, %c0_15] : memref<8x32x256xbf16, #tpu.memory_space<vmem>>, vector<1x32x256xbf16>
    %28 = vector.shape_cast %27 : vector<1x32x256xbf16> to vector<32x256xbf16>
    %cst_16 = arith.constant dense<0.000000e+00> : vector<256x128xf32>
    %29 = tpu.matmul %28, %0, %cst_16 {dimension_numbers = #tpu.dot_dimension_numbers<[0], [0], [1], [1], [0, 1, 1, 1], [], []>} : vector<32x256xbf16>, vector<32x128xbf16>, vector<256x128xf32> -> vector<256x128xf32>
    %30 = vector.broadcast %1 : vector<1x128xf32> to vector<256x128xf32>
    %31 = arith.addf %29, %30 : vector<256x128xf32>
    %cst_17 = arith.constant 0.000000e+00 : f32
    %32 = vector.broadcast %cst_17 : f32 to vector<256x128xf32>
    %33 = arith.maximumf %31, %32 : vector<256x128xf32>
    %cst_18 = arith.constant dense<0.000000e+00> : vector<128xf32>
    %34 = vector.multi_reduction <add>, %33, %cst_18 [0] : vector<256x128xf32> to vector<128xf32>
    %35 = vector.shape_cast %34 : vector<128xf32> to vector<1x128xf32>
    %36 = arith.index_cast %c2_i32 : i32 to index
    %c0_19 = arith.constant 0 : index
    %37 = vector.load %arg7[%36, %c0_19] : memref<8x128xf32, #tpu.memory_space<vmem>>, vector<1x128xf32>
    tpu.vector_store %arg7[%36, %c0_19], %35 {strides = array<i32>} : memref<8x128xf32, #tpu.memory_space<vmem>>, vector<1x128xf32>,
    %c3_i32 = arith.constant 3 : i32
    %38 = arith.index_cast %c3_i32 : i32 to index
    %c0_20 = arith.constant 0 : index
    %c0_21 = arith.constant 0 : index
    %39 = vector.load %arg1[%38, %c0_20, %c0_21] : memref<8x32x256xbf16, #tpu.memory_space<vmem>>, vector<1x32x256xbf16>
    %40 = vector.shape_cast %39 : vector<1x32x256xbf16> to vector<32x256xbf16>
    %cst_22 = arith.constant dense<0.000000e+00> : vector<256x128xf32>
    %41 = tpu.matmul %40, %0, %cst_22 {dimension_numbers = #tpu.dot_dimension_numbers<[0], [0], [1], [1], [0, 1, 1, 1], [], []>} : vector<32x256xbf16>, vector<32x128xbf16>, vector<256x128xf32> -> vector<256x128xf32>
    %42 = vector.broadcast %1 : vector<1x128xf32> to vector<256x128xf32>
    %43 = arith.addf %41, %42 : vector<256x128xf32>
    %cst_23 = arith.constant 0.000000e+00 : f32
    %44 = vector.broadcast %cst_23 : f32 to vector<256x128xf32>
    %45 = arith.maximumf %43, %44 : vector<256x128xf32>
    %cst_24 = arith.constant dense<0.000000e+00> : vector<128xf32>
    %46 = vector.multi_reduction <add>, %45, %cst_24 [0] : vector<256x128xf32> to vector<128xf32>
    %47 = vector.shape_cast %46 : vector<128xf32> to vector<1x128xf32>
    %48 = arith.index_cast %c3_i32 : i32 to index
    %c0_25 = arith.constant 0 : index
    %49 = vector.load %arg7[%48, %c0_25] : memref<8x128xf32, #tpu.memory_space<vmem>>, vector<1x128xf32>
    tpu.vector_store %arg7[%48, %c0_25], %47 {strides = array<i32>} : memref<8x128xf32, #tpu.memory_space<vmem>>, vector<1x128xf32>,
    %c4_i32 = arith.constant 4 : i32
    %50 = arith.index_cast %c4_i32 : i32 to index
    %c0_26 = arith.constant 0 : index
    %c0_27 = arith.constant 0 : index
    %51 = vector.load %arg1[%50, %c0_26, %c0_27] : memref<8x32x256xbf16, #tpu.memory_space<vmem>>, vector<1x32x256xbf16>
    %52 = vector.shape_cast %51 : vector<1x32x256xbf16> to vector<32x256xbf16>
    %cst_28 = arith.constant dense<0.000000e+00> : vector<256x128xf32>
    %53 = tpu.matmul %52, %0, %cst_28 {dimension_numbers = #tpu.dot_dimension_numbers<[0], [0], [1], [1], [0, 1, 1, 1], [], []>} : vector<32x256xbf16>, vector<32x128xbf16>, vector<256x128xf32> -> vector<256x128xf32>
    %54 = vector.broadcast %1 : vector<1x128xf32> to vector<256x128xf32>
    %55 = arith.addf %53, %54 : vector<256x128xf32>
    %cst_29 = arith.constant 0.000000e+00 : f32
    %56 = vector.broadcast %cst_29 : f32 to vector<256x128xf32>
    %57 = arith.maximumf %55, %56 : vector<256x128xf32>
    %cst_30 = arith.constant dense<0.000000e+00> : vector<128xf32>
    %58 = vector.multi_reduction <add>, %57, %cst_30 [0] : vector<256x128xf32> to vector<128xf32>
    %59 = vector.shape_cast %58 : vector<128xf32> to vector<1x128xf32>
    %60 = arith.index_cast %c4_i32 : i32 to index
    %c0_31 = arith.constant 0 : index
    %61 = vector.load %arg7[%60, %c0_31] : memref<8x128xf32, #tpu.memory_space<vmem>>, vector<1x128xf32>
    tpu.vector_store %arg7[%60, %c0_31], %59 {strides = array<i32>} : memref<8x128xf32, #tpu.memory_space<vmem>>, vector<1x128xf32>,
    %c5_i32 = arith.constant 5 : i32
    %62 = arith.index_cast %c5_i32 : i32 to index
    %c0_32 = arith.constant 0 : index
    %c0_33 = arith.constant 0 : index
    %63 = vector.load %arg1[%62, %c0_32, %c0_33] : memref<8x32x256xbf16, #tpu.memory_space<vmem>>, vector<1x32x256xbf16>
    %64 = vector.shape_cast %63 : vector<1x32x256xbf16> to vector<32x256xbf16>
    %cst_34 = arith.constant dense<0.000000e+00> : vector<256x128xf32>
    %65 = tpu.matmul %64, %0, %cst_34 {dimension_numbers = #tpu.dot_dimension_numbers<[0], [0], [1], [1], [0, 1, 1, 1], [], []>} : vector<32x256xbf16>, vector<32x128xbf16>, vector<256x128xf32> -> vector<256x128xf32>
    %66 = vector.broadcast %1 : vector<1x128xf32> to vector<256x128xf32>
    %67 = arith.addf %65, %66 : vector<256x128xf32>
    %cst_35 = arith.constant 0.000000e+00 : f32
    %68 = vector.broadcast %cst_35 : f32 to vector<256x128xf32>
    %69 = arith.maximumf %67, %68 : vector<256x128xf32>
    %cst_36 = arith.constant dense<0.000000e+00> : vector<128xf32>
    %70 = vector.multi_reduction <add>, %69, %cst_36 [0] : vector<256x128xf32> to vector<128xf32>
    %71 = vector.shape_cast %70 : vector<128xf32> to vector<1x128xf32>
    %72 = arith.index_cast %c5_i32 : i32 to index
    %c0_37 = arith.constant 0 : index
    %73 = vector.load %arg7[%72, %c0_37] : memref<8x128xf32, #tpu.memory_space<vmem>>, vector<1x128xf32>
    tpu.vector_store %arg7[%72, %c0_37], %71 {strides = array<i32>} : memref<8x128xf32, #tpu.memory_space<vmem>>, vector<1x128xf32>,
    %c6_i32 = arith.constant 6 : i32
    %74 = arith.index_cast %c6_i32 : i32 to index
    %c0_38 = arith.constant 0 : index
    %c0_39 = arith.constant 0 : index
    %75 = vector.load %arg1[%74, %c0_38, %c0_39] : memref<8x32x256xbf16, #tpu.memory_space<vmem>>, vector<1x32x256xbf16>
    %76 = vector.shape_cast %75 : vector<1x32x256xbf16> to vector<32x256xbf16>
    %cst_40 = arith.constant dense<0.000000e+00> : vector<256x128xf32>
    %77 = tpu.matmul %76, %0, %cst_40 {dimension_numbers = #tpu.dot_dimension_numbers<[0], [0], [1], [1], [0, 1, 1, 1], [], []>} : vector<32x256xbf16>, vector<32x128xbf16>, vector<256x128xf32> -> vector<256x128xf32>
    %78 = vector.broadcast %1 : vector<1x128xf32> to vector<256x128xf32>
    %79 = arith.addf %77, %78 : vector<256x128xf32>
    %cst_41 = arith.constant 0.000000e+00 : f32
    %80 = vector.broadcast %cst_41 : f32 to vector<256x128xf32>
    %81 = arith.maximumf %79, %80 : vector<256x128xf32>
    %cst_42 = arith.constant dense<0.000000e+00> : vector<128xf32>
    %82 = vector.multi_reduction <add>, %81, %cst_42 [0] : vector<256x128xf32> to vector<128xf32>
    %83 = vector.shape_cast %82 : vector<128xf32> to vector<1x128xf32>
    %84 = arith.index_cast %c6_i32 : i32 to index
    %c0_43 = arith.constant 0 : index
    %85 = vector.load %arg7[%84, %c0_43] : memref<8x128xf32, #tpu.memory_space<vmem>>, vector<1x128xf32>
    tpu.vector_store %arg7[%84, %c0_43], %83 {strides = array<i32>} : memref<8x128xf32, #tpu.memory_space<vmem>>, vector<1x128xf32>,
    %c7_i32 = arith.constant 7 : i32
    %86 = arith.index_cast %c7_i32 : i32 to index
    %c0_44 = arith.constant 0 : index
    %c0_45 = arith.constant 0 : index
    %87 = vector.load %arg1[%86, %c0_44, %c0_45] : memref<8x32x256xbf16, #tpu.memory_space<vmem>>, vector<1x32x256xbf16>
    %88 = vector.shape_cast %87 : vector<1x32x256xbf16> to vector<32x256xbf16>
    %cst_46 = arith.constant dense<0.000000e+00> : vector<256x128xf32>
    %89 = tpu.matmul %88, %0, %cst_46 {dimension_numbers = #tpu.dot_dimension_numbers<[0], [0], [1], [1], [0, 1, 1, 1], [], []>} : vector<32x256xbf16>, vector<32x128xbf16>, vector<256x128xf32> -> vector<256x128xf32>
    %90 = vector.broadcast %1 : vector<1x128xf32> to vector<256x128xf32>
    %91 = arith.addf %89, %90 : vector<256x128xf32>
    %cst_47 = arith.constant 0.000000e+00 : f32
    %92 = vector.broadcast %cst_47 : f32 to vector<256x128xf32>
    %93 = arith.maximumf %91, %92 : vector<256x128xf32>
    %cst_48 = arith.constant dense<0.000000e+00> : vector<128xf32>
    %94 = vector.multi_reduction <add>, %93, %cst_48 [0] : vector<256x128xf32> to vector<128xf32>
    %95 = vector.shape_cast %94 : vector<128xf32> to vector<1x128xf32>
    %96 = arith.index_cast %c7_i32 : i32 to index
    %c0_49 = arith.constant 0 : index
    %97 = vector.load %arg7[%96, %c0_49] : memref<8x128xf32, #tpu.memory_space<vmem>>, vector<1x128xf32>
    tpu.vector_store %arg7[%96, %c0_49], %95 {strides = array<i32>} : memref<8x128xf32, #tpu.memory_space<vmem>>, vector<1x128xf32>,
    %c8_i32 = arith.constant 8 : i32
    %c0_50 = arith.constant 0 : index
    %c0_51 = arith.constant 0 : index
    %98 = vector.load %arg7[%c0_50, %c0_51] : memref<8x128xf32, #tpu.memory_space<vmem>>, vector<8x128xf32>
    %99 = arith.truncf %98 : vector<8x128xf32> to vector<8x128xbf16>
    %c0_52 = arith.constant 0 : index
    %c0_53 = arith.constant 0 : index
    %100 = vector.load %arg4[%c0_52, %c0_53] : memref<128x128xbf16, #tpu.memory_space<vmem>>, vector<128x128xbf16>
    %cst_54 = arith.constant dense<0.000000e+00> : vector<8x128xf32>
    %101 = tpu.matmul %99, %100, %cst_54 {dimension_numbers = #tpu.dot_dimension_numbers<[1], [0], [0], [1], [0, 0, 1, 1], [], []>} : vector<8x128xbf16>, vector<128x128xbf16>, vector<8x128xf32> -> vector<8x128xf32>
    %c0_55 = arith.constant 0 : index
    %c0_56 = arith.constant 0 : index
    %102 = vector.load %arg5[%c0_55, %c0_56] : memref<1x128xf32, #tpu.memory_space<vmem>>, vector<1x128xf32>
    %103 = vector.broadcast %102 : vector<1x128xf32> to vector<8x128xf32>
    %104 = arith.addf %101, %103 : vector<8x128xf32>
    %c0_57 = arith.constant 0 : index
    %c0_58 = arith.constant 0 : index
    %105 = vector.load %arg6[%c0_57, %c0_58] : memref<8x128xf32, #tpu.memory_space<vmem>>, vector<8x128xf32>
    tpu.vector_store %arg6[%c0_57, %c0_58], %104 {strides = array<i32>} : memref<8x128xf32, #tpu.memory_space<vmem>>, vector<8x128xf32>,
    return
  }
  func.func @transform_0(%arg0: i32) -> (i32, i32, i32) {
    %c0_i32 = arith.constant 0 : i32
    %c0_i32_0 = arith.constant 0 : i32
    %c0_i32_1 = arith.constant 0 : i32
    return %arg0, %c0_i32, %c0_i32_0 : i32, i32, i32
  }
  func.func @transform_1(%arg0: i32) -> (i32, i32) {
    %c0_i32 = arith.constant 0 : i32
    %c0_i32_0 = arith.constant 0 : i32
    %c0_i32_1 = arith.constant 0 : i32
    return %c0_i32, %c0_i32_0 : i32, i32
  }
  func.func @transform_2(%arg0: i32) -> (i32, i32) {
    %c0_i32 = arith.constant 0 : i32
    %c0_i32_0 = arith.constant 0 : i32
    %c0_i32_1 = arith.constant 0 : i32
    return %c0_i32, %c0_i32_0 : i32, i32
  }
  func.func @transform_3(%arg0: i32) -> (i32, i32) {
    %c0_i32 = arith.constant 0 : i32
    %c0_i32_0 = arith.constant 0 : i32
    %c0_i32_1 = arith.constant 0 : i32
    return %c0_i32, %c0_i32_0 : i32, i32
  }
  func.func @transform_4(%arg0: i32) -> (i32, i32) {
    %c0_i32 = arith.constant 0 : i32
    %c0_i32_0 = arith.constant 0 : i32
    %c0_i32_1 = arith.constant 0 : i32
    return %c0_i32, %c0_i32_0 : i32, i32
  }
  func.func @transform_5(%arg0: i32) -> (i32, i32) {
    %c0_i32 = arith.constant 0 : i32
    %c0_i32_0 = arith.constant 0 : i32
    return %arg0, %c0_i32 : i32, i32
  }
}

</mosaic_0001>

<llo_original>
// kernel: custom-call.1
$region0: #{custom-call.1}
  %s0 = inlined_call_operand.vmem [shape: u8[2,16,16,3], index: 0, kind: output, shape index: {}]

// kernel: _annotate_jit.1
$region0: #{_annotate_jit.1}
  #allocation0 [shape = 'u32[]', space=smem, size = 0x4, offset = 0x4, fixed_abs, tag = 'smem constant byte address 0x4 - core index']
  #allocation1 [shape = 'u32[72,128]{1,0:T(1,128)}', space=vmem, size = 0x9000, scoped, tag = 'internal scratch']
  #allocation2 [shape = 'f32[8,128]{1,0:T(8,128)}', space=vmem, size = 0x1000, scoped, tag = 'scratch operand']
  %s0 = inlined_call_operand.vmem [shape: bf16[8,32,256], index: 0, kind: input, shape index: {}]
  %s1 = inlined_call_operand.vmem [shape: bf16[32,128], index: 1, kind: input, shape index: {}]
  %s2 = inlined_call_operand.vmem [shape: f32[1,128], index: 2, kind: input, shape index: {}]
  %s3 = inlined_call_operand.vmem [shape: bf16[128,128], index: 3, kind: input, shape index: {}]
  %s4 = inlined_call_operand.vmem [shape: f32[1,128], index: 4, kind: input, shape index: {}]
  %s5 = inlined_call_operand.vmem [shape: f32[8,128], index: 5, kind: output, shape index: {}]
  %s6 = sld [smem:[#allocation0]]
  $region30: #{_annotate_jit.1} parent=0
    _
  %s8 = ssub.s32 1, %s6
  %s9 = scalar_select 0, %s8, %s6
  // Predicated region
  $region2: #{_annotate_jit.1} parent=0 // pred_check
    _
  $region3: #{_annotate_jit.1} parent=0 // pred_check_branch
    %11 = sbr.rel (0) target = $region5
  $region4: #{_annotate_jit.1} parent=0 // pred_region
    _
  $region5: #{_annotate_jit.1} parent=0 // pred_fallthru
    _
  // Predicated region
  $region6: #{_annotate_jit.1} parent=0 // pred_check
    _
  $region7: #{_annotate_jit.1} parent=0 // pred_check_branch
    %13 = sbr.rel (0) target = $region9
  $region8: #{_annotate_jit.1} parent=0 // pred_region
    _
  $region9: #{_annotate_jit.1} parent=0 // pred_fallthru
    _
  // Predicated region
  $region10: #{_annotate_jit.1} parent=0 // pred_check
    _
  $region11: #{_annotate_jit.1} parent=0 // pred_check_branch
    %15 = sbr.rel (0) target = $region13
  $region12: #{_annotate_jit.1} parent=0 // pred_region
    _
  $region13: #{_annotate_jit.1} parent=0 // pred_fallthru
    _
  // Predicated region
  $region14: #{_annotate_jit.1} parent=0 // pred_check
    _
  $region15: #{_annotate_jit.1} parent=0 // pred_check_branch
    %17 = sbr.rel (0) target = $region17
  $region16: #{_annotate_jit.1} parent=0 // pred_region
    _
  $region17: #{_annotate_jit.1} parent=0 // pred_fallthru
    _
  // Predicated region
  $region18: #{_annotate_jit.1} parent=0 // pred_check
    _
  $region19: #{_annotate_jit.1} parent=0 // pred_check_branch
    %19 = sbr.rel (0) target = $region21
  $region20: #{_annotate_jit.1} parent=0 // pred_region
    _
  $region21: #{_annotate_jit.1} parent=0 // pred_fallthru
    _
  %v21 = vld [vmem:[%s1] sm:$0xf]
  %v22 = vld [vmem:[%s1 + $0x4] sm:$0xf]
  %v23 = vld [vmem:[%s1 + $0x8] sm:$0xf]
  %v24 = vld [vmem:[%s1 + $0xc] sm:$0xf]
  %v25 = vld [vmem:[%s2] sm:$0x1]
  %v26 = vld [vmem:[%s0] sm:$0xff]
  %v27 = vld [vmem:[%s0 + $0x8] sm:$0xff]
  %v28 = vld [vmem:[%s0 + $0x10] sm:$0xff]
  %v29 = vld [vmem:[%s0 + $0x18] sm:$0xff]
  %v31 = vperm.slane %v25, 0
  %v37 = vunpack.c.l.b16 %v26
  %v38 = vunpack.c.h.b16 %v26
  %v39 = vunpack.c.l.b16 %v27
  %v40 = vunpack.c.h.b16 %v27
  %v41 = vunpack.c.l.b16 %v28
  %v42 = vunpack.c.h.b16 %v28
  %v43 = vunpack.c.l.b16 %v29
  %v44 = vunpack.c.h.b16 %v29
  %v45 = vpack.c.b16 %v39, %v37
  %v46 = vpack.c.b16 %v40, %v38
  %v47 = vpack.c.b16 %v43, %v41
  %v48 = vpack.c.b16 %v44, %v42
  %53 = vxpose.binary.xlu0.c.b16.start [1/16] %v46, %v45, 128
  %54 = vxpose.binary.xlu0.c.b16.cont [2/16] %v48, %v47, 128
  %55 = vxpose.binary.xlu0.c.b16.cont [3/16] 0, 0, 128
  %56 = vxpose.binary.xlu0.c.b16.cont [4/16] 0, 0, 128
  %57 = vxpose.binary.xlu0.c.b16.cont [5/16] 0, 0, 128
  %58 = vxpose.binary.xlu0.c.b16.cont [6/16] 0, 0, 128
  %59 = vxpose.binary.xlu0.c.b16.cont [7/16] 0, 0, 128
  %60 = vxpose.binary.xlu0.c.b16.end [8/16] 0, 0, 128
  %v61 = vpop.trf.xlu0
  %v62 = vpop.trf.xlu0
  %v63 = vpop.trf.xlu0
  %v64 = vpop.trf.xlu0
  %v65 = vpop.trf.xlu0
  %v66 = vpop.trf.xlu0
  %v67 = vpop.trf.xlu0
  %v68 = vpop.trf.xlu0
  %v69 = vpop.trf.xlu0
  %v70 = vpop.trf.xlu0
  %v71 = vpop.trf.xlu0
  %v72 = vpop.trf.xlu0
  %v73 = vpop.trf.xlu0
  %v74 = vpop.trf.xlu0
  %v75 = vpop.trf.xlu0
  %v76 = vpop.trf.xlu0
  %v81 = vunpack.c.l.b16 %v21
  %v82 = vunpack.c.l.b16 %v22
  %v83 = vunpack.c.l.b16 %v23
  %v84 = vunpack.c.l.b16 %v24
  %v85 = vpack.c.b16 %v82, %v81
  %v86 = vpack.c.b16 %v84, %v83
  %vm89 = vcmask 261120
  %v91 = vsel %vm89, %v61, 0
  %v94 = vsel %vm89, %v63, 0
  %v97 = vsel %vm89, %v65, 0
  %v100 = vsel %vm89, %v67, 0
  %v103 = vsel %vm89, %v69, 0
  %v106 = vsel %vm89, %v71, 0
  %v109 = vsel %vm89, %v73, 0
  %v112 = vsel %vm89, %v75, 0
  %v115 = vsel %vm89, %v62, 0
  %v118 = vsel %vm89, %v64, 0
  %v121 = vsel %vm89, %v66, 0
  %v124 = vsel %vm89, %v68, 0
  %v127 = vsel %vm89, %v70, 0
  %v130 = vsel %vm89, %v72, 0
  %v133 = vsel %vm89, %v74, 0
  %v136 = vsel %vm89, %v76, 0
  %138 = vmatpush.bf16.msra.mxu0 0
  %139 = vmatpush.bf16.msra.mxu0 0
  %140 = vmatpush.bf16.msra.mxu0 0
  %141 = vmatpush.bf16.msra.mxu0 0
  %142 = vmatpush.bf16.msra.mxu0 0
  %143 = vmatpush.bf16.msra.mxu0 0
  %144 = vmatpush.bf16.msra.mxu0 %v86
  %145 = vmatpush.bf16.msra.mxu0 %v85
  %146 = vmatmul.bf16.gmra.mxu0 %v91
  %v147 = vpop.f32.mrf.mxu0
  %v148 = vadd.f32 %v31, %v147
  %v149 = vpop.f32.mrf.mxu0
  %v150 = vadd.f32 %v31, %v149
  %151 = vmatmul.bf16.gmra.mxu0 %v94
  %v152 = vpop.f32.mrf.mxu0
  %v153 = vadd.f32 %v31, %v152
  %v154 = vpop.f32.mrf.mxu0
  %v155 = vadd.f32 %v31, %v154
  %156 = vmatmul.bf16.gmra.mxu0 %v97
  %v157 = vpop.f32.mrf.mxu0
  %v158 = vadd.f32 %v31, %v157
  %v159 = vpop.f32.mrf.mxu0
  %v160 = vadd.f32 %v31, %v159
  %161 = vmatmul.bf16.gmra.mxu0 %v100
  %v162 = vpop.f32.mrf.mxu0
  %v163 = vadd.f32 %v31, %v162
  %v164 = vpop.f32.mrf.mxu0
  %v165 = vadd.f32 %v31, %v164
  %166 = vmatmul.bf16.gmra.mxu0 %v103
  %v167 = vpop.f32.mrf.mxu0
  %v168 = vadd.f32 %v31, %v167
  %v169 = vpop.f32.mrf.mxu0
  %v170 = vadd.f32 %v31, %v169
  %171 = vmatmul.bf16.gmra.mxu0 %v106
  %v172 = vpop.f32.mrf.mxu0
  %v173 = vadd.f32 %v31, %v172
  %v174 = vpop.f32.mrf.mxu0
  %v175 = vadd.f32 %v31, %v174
  %176 = vmatmul.bf16.gmra.mxu0 %v109
  %v177 = vpop.f32.mrf.mxu0
  %v178 = vadd.f32 %v31, %v177
  %v179 = vpop.f32.mrf.mxu0
  %v180 = vadd.f32 %v31, %v179
  %181 = vmatmul.bf16.gmra.mxu0 %v112
  %v182 = vpop.f32.mrf.mxu0
  %v183 = vadd.f32 %v31, %v182
  %v184 = vpop.f32.mrf.mxu0
  %v185 = vadd.f32 %v31, %v184
  %186 = vmatmul.bf16.gmra.mxu0 %v115
  %v187 = vpop.f32.mrf.mxu0
  %v188 = vadd.f32 %v31, %v187
  %v189 = vpop.f32.mrf.mxu0
  %v190 = vadd.f32 %v31, %v189
  %191 = vmatmul.bf16.gmra.mxu0 %v118
  %v192 = vpop.f32.mrf.mxu0
  %v193 = vadd.f32 %v31, %v192
  %v194 = vpop.f32.mrf.mxu0
  %v195 = vadd.f32 %v31, %v194
  %196 = vmatmul.bf16.gmra.mxu0 %v121
  %v197 = vpop.f32.mrf.mxu0
  %v198 = vadd.f32 %v31, %v197
  %v199 = vpop.f32.mrf.mxu0
  %v200 = vadd.f32 %v31, %v199
  %201 = vmatmul.bf16.gmra.mxu0 %v124
  %v202 = vpop.f32.mrf.mxu0
  %v203 = vadd.f32 %v31, %v202
  %v204 = vpop.f32.mrf.mxu0
  %v205 = vadd.f32 %v31, %v204
  %206 = vmatmul.bf16.gmra.mxu0 %v127
  %v207 = vpop.f32.mrf.mxu0
  %v208 = vadd.f32 %v31, %v207
  %v209 = vpop.f32.mrf.mxu0
  %v210 = vadd.f32 %v31, %v209
  %211 = vmatmul.bf16.gmra.mxu0 %v130
  %v212 = vpop.f32.mrf.mxu0
  %v213 = vadd.f32 %v31, %v212
  %v214 = vpop.f32.mrf.mxu0
  %v215 = vadd.f32 %v31, %v214
  %216 = vmatmul.bf16.gmra.mxu0 %v133
  %v217 = vpop.f32.mrf.mxu0
  %v218 = vadd.f32 %v31, %v217
  %v219 = vpop.f32.mrf.mxu0
  %v220 = vadd.f32 %v31, %v219
  %221 = vmatmul.bf16.gmra.mxu0 %v136
  %v222 = vpop.f32.mrf.mxu0
  %v223 = vadd.f32 %v31, %v222
  %v224 = vpop.f32.mrf.mxu0
  %v225 = vadd.f32 %v31, %v224
  %226 = vdwg.mxu0
  %v227 = vmax.f32 %v148, 0.0
  %v228 = vmax.f32 %v150, 0.0
  %v229 = vmax.f32 %v153, 0.0
  %v230 = vmax.f32 %v155, 0.0
  %v231 = vmax.f32 %v158, 0.0
  %v232 = vmax.f32 %v160, 0.0
  %v233 = vmax.f32 %v163, 0.0
  %v234 = vmax.f32 %v165, 0.0
  %v235 = vmax.f32 %v168, 0.0
  %v236 = vmax.f32 %v170, 0.0
  %v237 = vmax.f32 %v173, 0.0
  %v238 = vmax.f32 %v175, 0.0
  %v239 = vmax.f32 %v178, 0.0
  %v240 = vmax.f32 %v180, 0.0
  %v241 = vmax.f32 %v183, 0.0
  %v242 = vmax.f32 %v185, 0.0
  %v243 = vmax.f32 %v188, 0.0
  %v244 = vmax.f32 %v190, 0.0
  %v245 = vmax.f32 %v193, 0.0
  %v246 = vmax.f32 %v195, 0.0
  %v247 = vmax.f32 %v198, 0.0
  %v248 = vmax.f32 %v200, 0.0
  %v249 = vmax.f32 %v203, 0.0
  %v250 = vmax.f32 %v205, 0.0
  %v251 = vmax.f32 %v208, 0.0
  %v252 = vmax.f32 %v210, 0.0
  %v253 = vmax.f32 %v213, 0.0
  %v254 = vmax.f32 %v215, 0.0
  %v255 = vmax.f32 %v218, 0.0
  %v256 = vmax.f32 %v220, 0.0
  %v257 = vmax.f32 %v223, 0.0
  %v258 = vmax.f32 %v225, 0.0
  %v259 = vadd.f32 %v227, %v228
  %v260 = vadd.f32 %v259, %v229
  %v261 = vadd.f32 %v260, %v230
  %v262 = vadd.f32 %v261, %v231
  %v263 = vadd.f32 %v262, %v232
  %v264 = vadd.f32 %v263, %v233
  %v265 = vadd.f32 %v264, %v234
  %v266 = vadd.f32 %v265, %v235
  %v267 = vadd.f32 %v266, %v236
  %v268 = vadd.f32 %v267, %v237
  %v269 = vadd.f32 %v268, %v238
  %v270 = vadd.f32 %v269, %v239
  %v271 = vadd.f32 %v270, %v240
  %v272 = vadd.f32 %v271, %v241
  %v273 = vadd.f32 %v272, %v242
  %v274 = vadd.f32 %v273, %v243
  %v275 = vadd.f32 %v274, %v244
  %v276 = vadd.f32 %v275, %v245
  %v277 = vadd.f32 %v276, %v246
  %v278 = vadd.f32 %v277, %v247
  %v279 = vadd.f32 %v278, %v248
  %v280 = vadd.f32 %v279, %v249
  %v281 = vadd.f32 %v280, %v250
  %v282 = vadd.f32 %v281, %v251
  %v283 = vadd.f32 %v282, %v252
  %v284 = vadd.f32 %v283, %v253
  %v285 = vadd.f32 %v284, %v254
  %v286 = vadd.f32 %v285, %v255
  %v287 = vadd.f32 %v286, %v256
  %v288 = vadd.f32 %v287, %v257
  %v289 = vadd.f32 %v288, %v258
  %v290 = vrot.slane %v289, 4
  %v291 = vadd.f32 %v289, %v290
  %v292 = vrot.slane %v291, 2
  %v293 = vadd.f32 %v291, %v292
  %v294 = vrot.slane %v293, 1
  %v295 = vadd.f32 %v293, %v294
  %296 = vst [vmem:[#allocation2] sm:$0x1] %v295
  %s297 = scalar_lea.vmem %s0, 32
  %v298 = vld [vmem:[%s297] sm:$0xff]
  %v299 = vld [vmem:[%s297 + $0x8] sm:$0xff]
  %v300 = vld [vmem:[%s297 + $0x10] sm:$0xff]
  %v301 = vld [vmem:[%s297 + $0x18] sm:$0xff]
  %v306 = vunpack.c.l.b16 %v298
  %v307 = vunpack.c.h.b16 %v298
  %v308 = vunpack.c.l.b16 %v299
  %v309 = vunpack.c.h.b16 %v299
  %v310 = vunpack.c.l.b16 %v300
  %v311 = vunpack.c.h.b16 %v300
  %v312 = vunpack.c.l.b16 %v301
  %v313 = vunpack.c.h.b16 %v301
  %v314 = vpack.c.b16 %v308, %v306
  %v315 = vpack.c.b16 %v309, %v307
  %v316 = vpack.c.b16 %v312, %v310
  %v317 = vpack.c.b16 %v313, %v311
  %322 = vxpose.binary.xlu0.c.b16.start [1/16] %v315, %v314, 128
  %323 = vxpose.binary.xlu0.c.b16.cont [2/16] %v317, %v316, 128
  %324 = vxpose.binary.xlu0.c.b16.cont [3/16] 0, 0, 128
  %325 = vxpose.binary.xlu0.c.b16.cont [4/16] 0, 0, 128
  %326 = vxpose.binary.xlu0.c.b16.cont [5/16] 0, 0, 128
  %327 = vxpose.binary.xlu0.c.b16.cont [6/16] 0, 0, 128
  %328 = vxpose.binary.xlu0.c.b16.cont [7/16] 0, 0, 128
  %329 = vxpose.binary.xlu0.c.b16.end [8/16] 0, 0, 128
  %v330 = vpop.trf.xlu0
  %v331 = vpop.trf.xlu0
  %v332 = vpop.trf.xlu0
  %v333 = vpop.trf.xlu0
  %v334 = vpop.trf.xlu0
  %v335 = vpop.trf.xlu0
  %v336 = vpop.trf.xlu0
  %v337 = vpop.trf.xlu0
  %v338 = vpop.trf.xlu0
  %v339 = vpop.trf.xlu0
  %v340 = vpop.trf.xlu0
  %v341 = vpop.trf.xlu0
  %v342 = vpop.trf.xlu0
  %v343 = vpop.trf.xlu0
  %v344 = vpop.trf.xlu0
  %v345 = vpop.trf.xlu0
  %v347 = vsel %vm89, %v330, 0
  %v350 = vsel %vm89, %v332, 0
  %v353 = vsel %vm89, %v334, 0
  %v356 = vsel %vm89, %v336, 0
  %v359 = vsel %vm89, %v338, 0
  %v362 = vsel %vm89, %v340, 0
  %v365 = vsel %vm89, %v342, 0
  %v368 = vsel %vm89, %v344, 0
  %v371 = vsel %vm89, %v331, 0
  %v374 = vsel %vm89, %v333, 0
  %v377 = vsel %vm89, %v335, 0
  %v380 = vsel %vm89, %v337, 0
  %v383 = vsel %vm89, %v339, 0
  %v386 = vsel %vm89, %v341, 0
  %v389 = vsel %vm89, %v343, 0
  %v392 = vsel %vm89, %v345, 0
  %394 = vmatpush.bf16.msra.mxu0 0
  %395 = vmatpush.bf16.msra.mxu0 0
  %396 = vmatpush.bf16.msra.mxu0 0
  %397 = vmatpush.bf16.msra.mxu0 0
  %398 = vmatpush.bf16.msra.mxu0 0
  %399 = vmatpush.bf16.msra.mxu0 0
  %400 = vmatpush.bf16.msra.mxu0 %v86
  %401 = vmatpush.bf16.msra.mxu0 %v85
  %402 = vmatmul.bf16.gmra.mxu0 %v347
  %v403 = vpop.f32.mrf.mxu0
  %v404 = vadd.f32 %v31, %v403
  %v405 = vpop.f32.mrf.mxu0
  %v406 = vadd.f32 %v31, %v405
  %407 = vmatmul.bf16.gmra.mxu0 %v350
  %v408 = vpop.f32.mrf.mxu0
  %v409 = vadd.f32 %v31, %v408
  %v410 = vpop.f32.mrf.mxu0
  %v411 = vadd.f32 %v31, %v410
  %412 = vmatmul.bf16.gmra.mxu0 %v353
  %v413 = vpop.f32.mrf.mxu0
  %v414 = vadd.f32 %v31, %v413
  %v415 = vpop.f32.mrf.mxu0
  %v416 = vadd.f32 %v31, %v415
  %417 = vmatmul.bf16.gmra.mxu0 %v356
  %v418 = vpop.f32.mrf.mxu0
  %v419 = vadd.f32 %v31, %v418
  %v420 = vpop.f32.mrf.mxu0
  %v421 = vadd.f32 %v31, %v420
  %422 = vmatmul.bf16.gmra.mxu0 %v359
  %v423 = vpop.f32.mrf.mxu0
  %v424 = vadd.f32 %v31, %v423
  %v425 = vpop.f32.mrf.mxu0
  %v426 = vadd.f32 %v31, %v425
  %427 = vmatmul.bf16.gmra.mxu0 %v362
  %v428 = vpop.f32.mrf.mxu0
  %v429 = vadd.f32 %v31, %v428
  %v430 = vpop.f32.mrf.mxu0
  %v431 = vadd.f32 %v31, %v430
  %432 = vmatmul.bf16.gmra.mxu0 %v365
  %v433 = vpop.f32.mrf.mxu0
  %v434 = vadd.f32 %v31, %v433
  %v435 = vpop.f32.mrf.mxu0
  %v436 = vadd.f32 %v31, %v435
  %437 = vmatmul.bf16.gmra.mxu0 %v368
  %v438 = vpop.f32.mrf.mxu0
  %v439 = vadd.f32 %v31, %v438
  %v440 = vpop.f32.mrf.mxu0
  %v441 = vadd.f32 %v31, %v440
  %442 = vmatmul.bf16.gmra.mxu0 %v371
  %v443 = vpop.f32.mrf.mxu0
  %v444 = vadd.f32 %v31, %v443
  %v445 = vpop.f32.mrf.mxu0
  %v446 = vadd.f32 %v31, %v445
  %447 = vmatmul.bf16.gmra.mxu0 %v374
  %v448 = vpop.f32.mrf.mxu0
  %v449 = vadd.f32 %v31, %v448
  %v450 = vpop.f32.mrf.mxu0
  %v451 = vadd.f32 %v31, %v450
  %452 = vmatmul.bf16.gmra.mxu0 %v377
  %v453 = vpop.f32.mrf.mxu0
  %v454 = vadd.f32 %v31, %v453
  %v455 = vpop.f32.mrf.mxu0
  %v456 = vadd.f32 %v31, %v455
  %457 = vmatmul.bf16.gmra.mxu0 %v380
  %v458 = vpop.f32.mrf.mxu0
  %v459 = vadd.f32 %v31, %v458
  %v460 = vpop.f32.mrf.mxu0
  %v461 = vadd.f32 %v31, %v460
  %462 = vmatmul.bf16.gmra.mxu0 %v383
  %v463 = vpop.f32.mrf.mxu0
  %v464 = vadd.f32 %v31, %v463
  %v465 = vpop.f32.mrf.mxu0
  %v466 = vadd.f32 %v31, %v465
  %467 = vmatmul.bf16.gmra.mxu0 %v386
  %v468 = vpop.f32.mrf.mxu0
  %v469 = vadd.f32 %v31, %v468
  %v470 = vpop.f32.mrf.mxu0
  %v471 = vadd.f32 %v31, %v470
  %472 = vmatmul.bf16.gmra.mxu0 %v389
  %v473 = vpop.f32.mrf.mxu0
  %v474 = vadd.f32 %v31, %v473
  %v475 = vpop.f32.mrf.mxu0
  %v476 = vadd.f32 %v31, %v475
  %477 = vmatmul.bf16.gmra.mxu0 %v392
  %v478 = vpop.f32.mrf.mxu0
  %v479 = vadd.f32 %v31, %v478
  %v480 = vpop.f32.mrf.mxu0
  %v481 = vadd.f32 %v31, %v480
  %482 = vdwg.mxu0
  %v483 = vmax.f32 %v404, 0.0
  %v484 = vmax.f32 %v406, 0.0
  %v485 = vmax.f32 %v409, 0.0
  %v486 = vmax.f32 %v411, 0.0
  %v487 = vmax.f32 %v414, 0.0
  %v488 = vmax.f32 %v416, 0.0
  %v489 = vmax.f32 %v419, 0.0
  %v490 = vmax.f32 %v421, 0.0
  %v491 = vmax.f32 %v424, 0.0
  %v492 = vmax.f32 %v426, 0.0
  %v493 = vmax.f32 %v429, 0.0
  %v494 = vmax.f32 %v431, 0.0
  %v495 = vmax.f32 %v434, 0.0
  %v496 = vmax.f32 %v436, 0.0
  %v497 = vmax.f32 %v439, 0.0
  %v498 = vmax.f32 %v441, 0.0
  %v499 = vmax.f32 %v444, 0.0
  %v500 = vmax.f32 %v446, 0.0
  %v501 = vmax.f32 %v449, 0.0
  %v502 = vmax.f32 %v451, 0.0
  %v503 = vmax.f32 %v454, 0.0
  %v504 = vmax.f32 %v456, 0.0
  %v505 = vmax.f32 %v459, 0.0
  %v506 = vmax.f32 %v461, 0.0
  %v507 = vmax.f32 %v464, 0.0
  %v508 = vmax.f32 %v466, 0.0
  %v509 = vmax.f32 %v469, 0.0
  %v510 = vmax.f32 %v471, 0.0
  %v511 = vmax.f32 %v474, 0.0
  %v512 = vmax.f32 %v476, 0.0
  %v513 = vmax.f32 %v479, 0.0
  %v514 = vmax.f32 %v481, 0.0
  %v515 = vadd.f32 %v483, %v484
  %v516 = vadd.f32 %v515, %v485
  %v517 = vadd.f32 %v516, %v486
  %v518 = vadd.f32 %v517, %v487
  %v519 = vadd.f32 %v518, %v488
  %v520 = vadd.f32 %v519, %v489
  %v521 = vadd.f32 %v520, %v490
  %v522 = vadd.f32 %v521, %v491
  %v523 = vadd.f32 %v522, %v492
  %v524 = vadd.f32 %v523, %v493
  %v525 = vadd.f32 %v524, %v494
  %v526 = vadd.f32 %v525, %v495
  %v527 = vadd.f32 %v526, %v496
  %v528 = vadd.f32 %v527, %v497
  %v529 = vadd.f32 %v528, %v498
  %v530 = vadd.f32 %v529, %v499
  %v531 = vadd.f32 %v530, %v500
  %v532 = vadd.f32 %v531, %v501
  %v533 = vadd.f32 %v532, %v502
  %v534 = vadd.f32 %v533, %v503
  %v535 = vadd.f32 %v534, %v504
  %v536 = vadd.f32 %v535, %v505
  %v537 = vadd.f32 %v536, %v506
  %v538 = vadd.f32 %v537, %v507
  %v539 = vadd.f32 %v538, %v508
  %v540 = vadd.f32 %v539, %v509
  %v541 = vadd.f32 %v540, %v510
  %v542 = vadd.f32 %v541, %v511
  %v543 = vadd.f32 %v542, %v512
  %v544 = vadd.f32 %v543, %v513
  %v545 = vadd.f32 %v544, %v514
  %v546 = vrot.slane %v545, 4
  %v547 = vadd.f32 %v545, %v546
  %v548 = vrot.slane %v547, 2
  %v549 = vadd.f32 %v547, %v548
  %v550 = vrot.slane %v549, 1
  %v551 = vadd.f32 %v549, %v550
  %552 = vst [vmem:[#allocation2 + $0x1] sm:$0x1] %v551
  %s553 = scalar_lea.vmem %s0, 64
  %v554 = vld [vmem:[%s553] sm:$0xff]
  %v555 = vld [vmem:[%s553 + $0x8] sm:$0xff]
  %v556 = vld [vmem:[%s553 + $0x10] sm:$0xff]
  %v557 = vld [vmem:[%s553 + $0x18] sm:$0xff]
  %v562 = vunpack.c.l.b16 %v554
  %v563 = vunpack.c.h.b16 %v554
  %v564 = vunpack.c.l.b16 %v555
  %v565 = vunpack.c.h.b16 %v555
  %v566 = vunpack.c.l.b16 %v556
  %v567 = vunpack.c.h.b16 %v556
  %v568 = vunpack.c.l.b16 %v557
  %v569 = vunpack.c.h.b16 %v557
  %v570 = vpack.c.b16 %v564, %v562
  %v571 = vpack.c.b16 %v565, %v563
  %v572 = vpack.c.b16 %v568, %v566
  %v573 = vpack.c.b16 %v569, %v567
  %578 = vxpose.binary.xlu0.c.b16.start [1/16] %v571, %v570, 128
  %579 = vxpose.binary.xlu0.c.b16.cont [2/16] %v573, %v572, 128
  %580 = vxpose.binary.xlu0.c.b16.cont [3/16] 0, 0, 128
  %581 = vxpose.binary.xlu0.c.b16.cont [4/16] 0, 0, 128
  %582 = vxpose.binary.xlu0.c.b16.cont [5/16] 0, 0, 128
  %583 = vxpose.binary.xlu0.c.b16.cont [6/16] 0, 0, 128
  %584 = vxpose.binary.xlu0.c.b16.cont [7/16] 0, 0, 128
  %585 = vxpose.binary.xlu0.c.b16.end [8/16] 0, 0, 128
  %v586 = vpop.trf.xlu0
  %v587 = vpop.trf.xlu0
  %v588 = vpop.trf.xlu0
  %v589 = vpop.trf.xlu0
  %v590 = vpop.trf.xlu0
  %v591 = vpop.trf.xlu0
  %v592 = vpop.trf.xlu0
  %v593 = vpop.trf.xlu0
  %v594 = vpop.trf.xlu0
  %v595 = vpop.trf.xlu0
  %v596 = vpop.trf.xlu0
  %v597 = vpop.trf.xlu0
  %v598 = vpop.trf.xlu0
  %v599 = vpop.trf.xlu0
  %v600 = vpop.trf.xlu0
  %v601 = vpop.trf.xlu0
  %v603 = vsel %vm89, %v586, 0
  %v606 = vsel %vm89, %v588, 0
  %v609 = vsel %vm89, %v590, 0
  %v612 = vsel %vm89, %v592, 0
  %v615 = vsel %vm89, %v594, 0
  %v618 = vsel %vm89, %v596, 0
  %v621 = vsel %vm89, %v598, 0
  %v624 = vsel %vm89, %v600, 0
  %v627 = vsel %vm89, %v587, 0
  %v630 = vsel %vm89, %v589, 0
  %v633 = vsel %vm89, %v591, 0
  %v636 = vsel %vm89, %v593, 0
  %v639 = vsel %vm89, %v595, 0
  %v642 = vsel %vm89, %v597, 0
  %v645 = vsel %vm89, %v599, 0
  %v648 = vsel %vm89, %v601, 0
  %650 = vmatpush.bf16.msra.mxu0 0
  %651 = vmatpush.bf16.msra.mxu0 0
  %652 = vmatpush.bf16.msra.mxu0 0
  %653 = vmatpush.bf16.msra.mxu0 0
  %654 = vmatpush.bf16.msra.mxu0 0
  %655 = vmatpush.bf16.msra.mxu0 0
  %656 = vmatpush.bf16.msra.mxu0 %v86
  %657 = vmatpush.bf16.msra.mxu0 %v85
  %658 = vmatmul.bf16.gmra.mxu0 %v603
  %v659 = vpop.f32.mrf.mxu0
  %v660 = vadd.f32 %v31, %v659
  %v661 = vpop.f32.mrf.mxu0
  %v662 = vadd.f32 %v31, %v661
  %663 = vmatmul.bf16.gmra.mxu0 %v606
  %v664 = vpop.f32.mrf.mxu0
  %v665 = vadd.f32 %v31, %v664
  %v666 = vpop.f32.mrf.mxu0
  %v667 = vadd.f32 %v31, %v666
  %668 = vmatmul.bf16.gmra.mxu0 %v609
  %v669 = vpop.f32.mrf.mxu0
  %v670 = vadd.f32 %v31, %v669
  %v671 = vpop.f32.mrf.mxu0
  %v672 = vadd.f32 %v31, %v671
  %673 = vmatmul.bf16.gmra.mxu0 %v612
  %v674 = vpop.f32.mrf.mxu0
  %v675 = vadd.f32 %v31, %v674
  %v676 = vpop.f32.mrf.mxu0
  %v677 = vadd.f32 %v31, %v676
  %678 = vmatmul.bf16.gmra.mxu0 %v615
  %v679 = vpop.f32.mrf.mxu0
  %v680 = vadd.f32 %v31, %v679
  %v681 = vpop.f32.mrf.mxu0
  %v682 = vadd.f32 %v31, %v681
  %683 = vmatmul.bf16.gmra.mxu0 %v618
  %v684 = vpop.f32.mrf.mxu0
  %v685 = vadd.f32 %v31, %v684
  %v686 = vpop.f32.mrf.mxu0
  %v687 = vadd.f32 %v31, %v686
  %688 = vmatmul.bf16.gmra.mxu0 %v621
  %v689 = vpop.f32.mrf.mxu0
  %v690 = vadd.f32 %v31, %v689
  %v691 = vpop.f32.mrf.mxu0
  %v692 = vadd.f32 %v31, %v691
  %693 = vmatmul.bf16.gmra.mxu0 %v624
  %v694 = vpop.f32.mrf.mxu0
  %v695 = vadd.f32 %v31, %v694
  %v696 = vpop.f32.mrf.mxu0
  %v697 = vadd.f32 %v31, %v696
  %698 = vmatmul.bf16.gmra.mxu0 %v627
  %v699 = vpop.f32.mrf.mxu0
  %v700 = vadd.f32 %v31, %v699
  %v701 = vpop.f32.mrf.mxu0
  %v702 = vadd.f32 %v31, %v701
  %703 = vmatmul.bf16.gmra.mxu0 %v630
  %v704 = vpop.f32.mrf.mxu0
  %v705 = vadd.f32 %v31, %v704
  %v706 = vpop.f32.mrf.mxu0
  %v707 = vadd.f32 %v31, %v706
  %708 = vmatmul.bf16.gmra.mxu0 %v633
  %v709 = vpop.f32.mrf.mxu0
  %v710 = vadd.f32 %v31, %v709
  %v711 = vpop.f32.mrf.mxu0
  %v712 = vadd.f32 %v31, %v711
  %713 = vmatmul.bf16.gmra.mxu0 %v636
  %v714 = vpop.f32.mrf.mxu0
  %v715 = vadd.f32 %v31, %v714
  %v716 = vpop.f32.mrf.mxu0
  %v717 = vadd.f32 %v31, %v716
  %718 = vmatmul.bf16.gmra.mxu0 %v639
  %v719 = vpop.f32.mrf.mxu0
  %v720 = vadd.f32 %v31, %v719
  %v721 = vpop.f32.mrf.mxu0
  %v722 = vadd.f32 %v31, %v721
  %723 = vmatmul.bf16.gmra.mxu0 %v642
  %v724 = vpop.f32.mrf.mxu0
  %v725 = vadd.f32 %v31, %v724
  %v726 = vpop.f32.mrf.mxu0
  %v727 = vadd.f32 %v31, %v726
  %728 = vmatmul.bf16.gmra.mxu0 %v645
  %v729 = vpop.f32.mrf.mxu0
  %v730 = vadd.f32 %v31, %v729
  %v731 = vpop.f32.mrf.mxu0
  %v732 = vadd.f32 %v31, %v731
  %733 = vmatmul.bf16.gmra.mxu0 %v648
  %v734 = vpop.f32.mrf.mxu0
  %v735 = vadd.f32 %v31, %v734
  %v736 = vpop.f32.mrf.mxu0
  %v737 = vadd.f32 %v31, %v736
  %738 = vdwg.mxu0
  %v739 = vmax.f32 %v660, 0.0
  %v740 = vmax.f32 %v662, 0.0
  %v741 = vmax.f32 %v665, 0.0
  %v742 = vmax.f32 %v667, 0.0
  %v743 = vmax.f32 %v670, 0.0
  %v744 = vmax.f32 %v672, 0.0
  %v745 = vmax.f32 %v675, 0.0
  %v746 = vmax.f32 %v677, 0.0
  %v747 = vmax.f32 %v680, 0.0
  %v748 = vmax.f32 %v682, 0.0
  %v749 = vmax.f32 %v685, 0.0
  %v750 = vmax.f32 %v687, 0.0
  %v751 = vmax.f32 %v690, 0.0
  %v752 = vmax.f32 %v692, 0.0
  %v753 = vmax.f32 %v695, 0.0
  %v754 = vmax.f32 %v697, 0.0
  %v755 = vmax.f32 %v700, 0.0
  %v756 = vmax.f32 %v702, 0.0
  %v757 = vmax.f32 %v705, 0.0
  %v758 = vmax.f32 %v707, 0.0
  %v759 = vmax.f32 %v710, 0.0
  %v760 = vmax.f32 %v712, 0.0
  %v761 = vmax.f32 %v715, 0.0
  %v762 = vmax.f32 %v717, 0.0
  %v763 = vmax.f32 %v720, 0.0
  %v764 = vmax.f32 %v722, 0.0
  %v765 = vmax.f32 %v725, 0.0
  %v766 = vmax.f32 %v727, 0.0
  %v767 = vmax.f32 %v730, 0.0
  %v768 = vmax.f32 %v732, 0.0
  %v769 = vmax.f32 %v735, 0.0
  %v770 = vmax.f32 %v737, 0.0
  %v771 = vadd.f32 %v739, %v740
  %v772 = vadd.f32 %v771, %v741
  %v773 = vadd.f32 %v772, %v742
  %v774 = vadd.f32 %v773, %v743
  %v775 = vadd.f32 %v774, %v744
  %v776 = vadd.f32 %v775, %v745
  %v777 = vadd.f32 %v776, %v746
  %v778 = vadd.f32 %v777, %v747
  %v779 = vadd.f32 %v778, %v748
  %v780 = vadd.f32 %v779, %v749
  %v781 = vadd.f32 %v780, %v750
  %v782 = vadd.f32 %v781, %v751
  %v783 = vadd.f32 %v782, %v752
  %v784 = vadd.f32 %v783, %v753
  %v785 = vadd.f32 %v784, %v754
  %v786 = vadd.f32 %v785, %v755
  %v787 = vadd.f32 %v786, %v756
  %v788 = vadd.f32 %v787, %v757
  %v789 = vadd.f32 %v788, %v758
  %v790 = vadd.f32 %v789, %v759
  %v791 = vadd.f32 %v790, %v760
  %v792 = vadd.f32 %v791, %v761
  %v793 = vadd.f32 %v792, %v762
  %v794 = vadd.f32 %v793, %v763
  %v795 = vadd.f32 %v794, %v764
  %v796 = vadd.f32 %v795, %v765
  %v797 = vadd.f32 %v796, %v766
  %v798 = vadd.f32 %v797, %v767
  %v799 = vadd.f32 %v798, %v768
  %v800 = vadd.f32 %v799, %v769
  %v801 = vadd.f32 %v800, %v770
  %v802 = vrot.slane %v801, 4
  %v803 = vadd.f32 %v801, %v802
  %v804 = vrot.slane %v803, 2
  %v805 = vadd.f32 %v803, %v804
  %v806 = vrot.slane %v805, 1
  %v807 = vadd.f32 %v805, %v806
  %808 = vst [vmem:[#allocation2 + $0x2] sm:$0x1] %v807
  %s809 = scalar_lea.vmem %s0, 96
  %v810 = vld [vmem:[%s809] sm:$0xff]
  %v811 = vld [vmem:[%s809 + $0x8] sm:$0xff]
  %v812 = vld [vmem:[%s809 + $0x10] sm:$0xff]
  %v813 = vld [vmem:[%s809 + $0x18] sm:$0xff]
  %v818 = vunpack.c.l.b16 %v810
  %v819 = vunpack.c.h.b16 %v810
  %v820 = vunpack.c.l.b16 %v811
  %v821 = vunpack.c.h.b16 %v811
  %v822 = vunpack.c.l.b16 %v812
  %v823 = vunpack.c.h.b16 %v812
  %v824 = vunpack.c.l.b16 %v813
  %v825 = vunpack.c.h.b16 %v813
  %v826 = vpack.c.b16 %v820, %v818
  %v827 = vpack.c.b16 %v821, %v819
  %v828 = vpack.c.b16 %v824, %v822
  %v829 = vpack.c.b16 %v825, %v823
  %834 = vxpose.binary.xlu0.c.b16.start [1/16] %v827, %v826, 128
  %835 = vxpose.binary.xlu0.c.b16.cont [2/16] %v829, %v828, 128
  %836 = vxpose.binary.xlu0.c.b16.cont [3/16] 0, 0, 128
  %837 = vxpose.binary.xlu0.c.b16.cont [4/16] 0, 0, 128
  %838 = vxpose.binary.xlu0.c.b16.cont [5/16] 0, 0, 128
  %839 = vxpose.binary.xlu0.c.b16.cont [6/16] 0, 0, 128
  %840 = vxpose.binary.xlu0.c.b16.cont [7/16] 0, 0, 128
  %841 = vxpose.binary.xlu0.c.b16.end [8/16] 0, 0, 128
  %v842 = vpop.trf.xlu0
  %v843 = vpop.trf.xlu0
  %v844 = vpop.trf.xlu0
  %v845 = vpop.trf.xlu0
  %v846 = vpop.trf.xlu0
  %v847 = vpop.trf.xlu0
  %v848 = vpop.trf.xlu0
  %v849 = vpop.trf.xlu0
  %v850 = vpop.trf.xlu0
  %v851 = vpop.trf.xlu0
  %v852 = vpop.trf.xlu0
  %v853 = vpop.trf.xlu0
  %v854 = vpop.trf.xlu0
  %v855 = vpop.trf.xlu0
  %v856 = vpop.trf.xlu0
  %v857 = vpop.trf.xlu0
  %v859 = vsel %vm89, %v842, 0
  %v862 = vsel %vm89, %v844, 0
  %v865 = vsel %vm89, %v846, 0
  %v868 = vsel %vm89, %v848, 0
  %v871 = vsel %vm89, %v850, 0
  %v874 = vsel %vm89, %v852, 0
  %v877 = vsel %vm89, %v854, 0
  %v880 = vsel %vm89, %v856, 0
  %v883 = vsel %vm89, %v843, 0
  %v886 = vsel %vm89, %v845, 0
  %v889 = vsel %vm89, %v847, 0
  %v892 = vsel %vm89, %v849, 0
  %v895 = vsel %vm89, %v851, 0
  %v898 = vsel %vm89, %v853, 0
  %v901 = vsel %vm89, %v855, 0
  %v904 = vsel %vm89, %v857, 0
  %906 = vmatpush.bf16.msra.mxu0 0
  %907 = vmatpush.bf16.msra.mxu0 0
  %908 = vmatpush.bf16.msra.mxu0 0
  %909 = vmatpush.bf16.msra.mxu0 0
  %910 = vmatpush.bf16.msra.mxu0 0
  %911 = vmatpush.bf16.msra.mxu0 0
  %912 = vmatpush.bf16.msra.mxu0 %v86
  %913 = vmatpush.bf16.msra.mxu0 %v85
  %914 = vmatmul.bf16.gmra.mxu0 %v859
  %v915 = vpop.f32.mrf.mxu0
  %v916 = vadd.f32 %v31, %v915
  %v917 = vpop.f32.mrf.mxu0
  %v918 = vadd.f32 %v31, %v917
  %919 = vmatmul.bf16.gmra.mxu0 %v862
  %v920 = vpop.f32.mrf.mxu0
  %v921 = vadd.f32 %v31, %v920
  %v922 = vpop.f32.mrf.mxu0
  %v923 = vadd.f32 %v31, %v922
  %924 = vmatmul.bf16.gmra.mxu0 %v865
  %v925 = vpop.f32.mrf.mxu0
  %v926 = vadd.f32 %v31, %v925
  %v927 = vpop.f32.mrf.mxu0
  %v928 = vadd.f32 %v31, %v927
  %929 = vmatmul.bf16.gmra.mxu0 %v868
  %v930 = vpop.f32.mrf.mxu0
  %v931 = vadd.f32 %v31, %v930
  %v932 = vpop.f32.mrf.mxu0
  %v933 = vadd.f32 %v31, %v932
  %934 = vmatmul.bf16.gmra.mxu0 %v871
  %v935 = vpop.f32.mrf.mxu0
  %v936 = vadd.f32 %v31, %v935
  %v937 = vpop.f32.mrf.mxu0
  %v938 = vadd.f32 %v31, %v937
  %939 = vmatmul.bf16.gmra.mxu0 %v874
  %v940 = vpop.f32.mrf.mxu0
  %v941 = vadd.f32 %v31, %v940
  %v942 = vpop.f32.mrf.mxu0
  %v943 = vadd.f32 %v31, %v942
  %944 = vmatmul.bf16.gmra.mxu0 %v877
  %v945 = vpop.f32.mrf.mxu0
  %v946 = vadd.f32 %v31, %v945
  %v947 = vpop.f32.mrf.mxu0
  %v948 = vadd.f32 %v31, %v947
  %949 = vmatmul.bf16.gmra.mxu0 %v880
  %v950 = vpop.f32.mrf.mxu0
  %v951 = vadd.f32 %v31, %v950
  %v952 = vpop.f32.mrf.mxu0
  %v953 = vadd.f32 %v31, %v952
  %954 = vmatmul.bf16.gmra.mxu0 %v883
  %v955 = vpop.f32.mrf.mxu0
  %v956 = vadd.f32 %v31, %v955
  %v957 = vpop.f32.mrf.mxu0
  %v958 = vadd.f32 %v31, %v957
  %959 = vmatmul.bf16.gmra.mxu0 %v886
  %v960 = vpop.f32.mrf.mxu0
  %v961 = vadd.f32 %v31, %v960
  %v962 = vpop.f32.mrf.mxu0
  %v963 = vadd.f32 %v31, %v962
  %964 = vmatmul.bf16.gmra.mxu0 %v889
  %v965 = vpop.f32.mrf.mxu0
  %v966 = vadd.f32 %v31, %v965
  %v967 = vpop.f32.mrf.mxu0
  %v968 = vadd.f32 %v31, %v967
  %969 = vmatmul.bf16.gmra.mxu0 %v892
  %v970 = vpop.f32.mrf.mxu0
  %v971 = vadd.f32 %v31, %v970
  %v972 = vpop.f32.mrf.mxu0
  %v973 = vadd.f32 %v31, %v972
  %974 = vmatmul.bf16.gmra.mxu0 %v895
  %v975 = vpop.f32.mrf.mxu0
  %v976 = vadd.f32 %v31, %v975
  %v977 = vpop.f32.mrf.mxu0
  %v978 = vadd.f32 %v31, %v977
  %979 = vmatmul.bf16.gmra.mxu0 %v898
  %v980 = vpop.f32.mrf.mxu0
  %v981 = vadd.f32 %v31, %v980
  %v982 = vpop.f32.mrf.mxu0
  %v983 = vadd.f32 %v31, %v982
  %984 = vmatmul.bf16.gmra.mxu0 %v901
  %v985 = vpop.f32.mrf.mxu0
  %v986 = vadd.f32 %v31, %v985
  %v987 = vpop.f32.mrf.mxu0
  %v988 = vadd.f32 %v31, %v987
  %989 = vmatmul.bf16.gmra.mxu0 %v904
  %v990 = vpop.f32.mrf.mxu0
  %v991 = vadd.f32 %v31, %v990
  %v992 = vpop.f32.mrf.mxu0
  %v993 = vadd.f32 %v31, %v992
  %994 = vdwg.mxu0
  %v995 = vmax.f32 %v916, 0.0
  %v996 = vmax.f32 %v918, 0.0
  %v997 = vmax.f32 %v921, 0.0
  %v998 = vmax.f32 %v923, 0.0
  %v999 = vmax.f32 %v926, 0.0
  %v1000 = vmax.f32 %v928, 0.0
  %v1001 = vmax.f32 %v931, 0.0
  %v1002 = vmax.f32 %v933, 0.0
  %v1003 = vmax.f32 %v936, 0.0
  %v1004 = vmax.f32 %v938, 0.0
  %v1005 = vmax.f32 %v941, 0.0
  %v1006 = vmax.f32 %v943, 0.0
  %v1007 = vmax.f32 %v946, 0.0
  %v1008 = vmax.f32 %v948, 0.0
  %v1009 = vmax.f32 %v951, 0.0
  %v1010 = vmax.f32 %v953, 0.0
  %v1011 = vmax.f32 %v956, 0.0
  %v1012 = vmax.f32 %v958, 0.0
  %v1013 = vmax.f32 %v961, 0.0
  %v1014 = vmax.f32 %v963, 0.0
  %v1015 = vmax.f32 %v966, 0.0
  %v1016 = vmax.f32 %v968, 0.0
  %v1017 = vmax.f32 %v971, 0.0
  %v1018 = vmax.f32 %v973, 0.0
  %v1019 = vmax.f32 %v976, 0.0
  %v1020 = vmax.f32 %v978, 0.0
  %v1021 = vmax.f32 %v981, 0.0
  %v1022 = vmax.f32 %v983, 0.0
  %v1023 = vmax.f32 %v986, 0.0
  %v1024 = vmax.f32 %v988, 0.0
  %v1025 = vmax.f32 %v991, 0.0
  %v1026 = vmax.f32 %v993, 0.0
  %v1027 = vadd.f32 %v995, %v996
  %v1028 = vadd.f32 %v1027, %v997
  %v1029 = vadd.f32 %v1028, %v998
  %v1030 = vadd.f32 %v1029, %v999
  %v1031 = vadd.f32 %v1030, %v1000
  %v1032 = vadd.f32 %v1031, %v1001
  %v1033 = vadd.f32 %v1032, %v1002
  %v1034 = vadd.f32 %v1033, %v1003
  %v1035 = vadd.f32 %v1034, %v1004
  %v1036 = vadd.f32 %v1035, %v1005
  %v1037 = vadd.f32 %v1036, %v1006
  %v1038 = vadd.f32 %v1037, %v1007
  %v1039 = vadd.f32 %v1038, %v1008
  %v1040 = vadd.f32 %v1039, %v1009
  %v1041 = vadd.f32 %v1040, %v1010
  %v1042 = vadd.f32 %v1041, %v1011
  %v1043 = vadd.f32 %v1042, %v1012
  %v1044 = vadd.f32 %v1043, %v1013
  %v1045 = vadd.f32 %v1044, %v1014
  %v1046 = vadd.f32 %v1045, %v1015
  %v1047 = vadd.f32 %v1046, %v1016
  %v1048 = vadd.f32 %v1047, %v1017
  %v1049 = vadd.f32 %v1048, %v1018
  %v1050 = vadd.f32 %v1049, %v1019
  %v1051 = vadd.f32 %v1050, %v1020
  %v1052 = vadd.f32 %v1051, %v1021
  %v1053 = vadd.f32 %v1052, %v1022
  %v1054 = vadd.f32 %v1053, %v1023
  %v1055 = vadd.f32 %v1054, %v1024
  %v1056 = vadd.f32 %v1055, %v1025
  %v1057 = vadd.f32 %v1056, %v1026
  %v1058 = vrot.slane %v1057, 4
  %v1059 = vadd.f32 %v1057, %v1058
  %v1060 = vrot.slane %v1059, 2
  %v1061 = vadd.f32 %v1059, %v1060
  %v1062 = vrot.slane %v1061, 1
  %v1063 = vadd.f32 %v1061, %v1062
  %1064 = vst [vmem:[#allocation2 + $0x3] sm:$0x1] %v1063
  %s1065 = scalar_lea.vmem %s0, 128
  %v1066 = vld [vmem:[%s1065] sm:$0xff]
  %v1067 = vld [vmem:[%s1065 + $0x8] sm:$0xff]
  %v1068 = vld [vmem:[%s1065 + $0x10] sm:$0xff]
  %v1069 = vld [vmem:[%s1065 + $0x18] sm:$0xff]
  %v1074 = vunpack.c.l.b16 %v1066
  %v1075 = vunpack.c.h.b16 %v1066
  %v1076 = vunpack.c.l.b16 %v1067
  %v1077 = vunpack.c.h.b16 %v1067
  %v1078 = vunpack.c.l.b16 %v1068
  %v1079 = vunpack.c.h.b16 %v1068
  %v1080 = vunpack.c.l.b16 %v1069
  %v1081 = vunpack.c.h.b16 %v1069
  %v1082 = vpack.c.b16 %v1076, %v1074
  %v1083 = vpack.c.b16 %v1077, %v1075
  %v1084 = vpack.c.b16 %v1080, %v1078
  %v1085 = vpack.c.b16 %v1081, %v1079
  %1090 = vxpose.binary.xlu0.c.b16.start [1/16] %v1083, %v1082, 128
  %1091 = vxpose.binary.xlu0.c.b16.cont [2/16] %v1085, %v1084, 128
  %1092 = vxpose.binary.xlu0.c.b16.cont [3/16] 0, 0, 128
  %1093 = vxpose.binary.xlu0.c.b16.cont [4/16] 0, 0, 128
  %1094 = vxpose.binary.xlu0.c.b16.cont [5/16] 0, 0, 128
  %1095 = vxpose.binary.xlu0.c.b16.cont [6/16] 0, 0, 128
  %1096 = vxpose.binary.xlu0.c.b16.cont [7/16] 0, 0, 128
  %1097 = vxpose.binary.xlu0.c.b16.end [8/16] 0, 0, 128
  %v1098 = vpop.trf.xlu0
  %v1099 = vpop.trf.xlu0
  %v1100 = vpop.trf.xlu0
  %v1101 = vpop.trf.xlu0
  %v1102 = vpop.trf.xlu0
  %v1103 = vpop.trf.xlu0
  %v1104 = vpop.trf.xlu0
  %v1105 = vpop.trf.xlu0
  %v1106 = vpop.trf.xlu0
  %v1107 = vpop.trf.xlu0
  %v1108 = vpop.trf.xlu0
  %v1109 = vpop.trf.xlu0
  %v1110 = vpop.trf.xlu0
  %v1111 = vpop.trf.xlu0
  %v1112 = vpop.trf.xlu0
  %v1113 = vpop.trf.xlu0
  %v1115 = vsel %vm89, %v1098, 0
  %v1118 = vsel %vm89, %v1100, 0
  %v1121 = vsel %vm89, %v1102, 0
  %v1124 = vsel %vm89, %v1104, 0
  %v1127 = vsel %vm89, %v1106, 0
  %v1130 = vsel %vm89, %v1108, 0
  %v1133 = vsel %vm89, %v1110, 0
  %v1136 = vsel %vm89, %v1112, 0
  %v1139 = vsel %vm89, %v1099, 0
  %v1142 = vsel %vm89, %v1101, 0
  %v1145 = vsel %vm89, %v1103, 0
  %v1148 = vsel %vm89, %v1105, 0
  %v1151 = vsel %vm89, %v1107, 0
  %v1154 = vsel %vm89, %v1109, 0
  %v1157 = vsel %vm89, %v1111, 0
  %v1160 = vsel %vm89, %v1113, 0
  %1162 = vmatpush.bf16.msra.mxu0 0
  %1163 = vmatpush.bf16.msra.mxu0 0
  %1164 = vmatpush.bf16.msra.mxu0 0
  %1165 = vmatpush.bf16.msra.mxu0 0
  %1166 = vmatpush.bf16.msra.mxu0 0
  %1167 = vmatpush.bf16.msra.mxu0 0
  %1168 = vmatpush.bf16.msra.mxu0 %v86
  %1169 = vmatpush.bf16.msra.mxu0 %v85
  %1170 = vmatmul.bf16.gmra.mxu0 %v1115
  %v1171 = vpop.f32.mrf.mxu0
  %v1172 = vadd.f32 %v31, %v1171
  %v1173 = vpop.f32.mrf.mxu0
  %v1174 = vadd.f32 %v31, %v1173
  %1175 = vmatmul.bf16.gmra.mxu0 %v1118
  %v1176 = vpop.f32.mrf.mxu0
  %v1177 = vadd.f32 %v31, %v1176
  %v1178 = vpop.f32.mrf.mxu0
  %v1179 = vadd.f32 %v31, %v1178
  %1180 = vmatmul.bf16.gmra.mxu0 %v1121
  %v1181 = vpop.f32.mrf.mxu0
  %v1182 = vadd.f32 %v31, %v1181
  %v1183 = vpop.f32.mrf.mxu0
  %v1184 = vadd.f32 %v31, %v1183
  %1185 = vmatmul.bf16.gmra.mxu0 %v1124
  %v1186 = vpop.f32.mrf.mxu0
  %v1187 = vadd.f32 %v31, %v1186
  %v1188 = vpop.f32.mrf.mxu0
  %v1189 = vadd.f32 %v31, %v1188
  %1190 = vmatmul.bf16.gmra.mxu0 %v1127
  %v1191 = vpop.f32.mrf.mxu0
  %v1192 = vadd.f32 %v31, %v1191
  %v1193 = vpop.f32.mrf.mxu0
  %v1194 = vadd.f32 %v31, %v1193
  %1195 = vmatmul.bf16.gmra.mxu0 %v1130
  %v1196 = vpop.f32.mrf.mxu0
  %v1197 = vadd.f32 %v31, %v1196
  %v1198 = vpop.f32.mrf.mxu0
  %v1199 = vadd.f32 %v31, %v1198
  %1200 = vmatmul.bf16.gmra.mxu0 %v1133
  %v1201 = vpop.f32.mrf.mxu0
  %v1202 = vadd.f32 %v31, %v1201
  %v1203 = vpop.f32.mrf.mxu0
  %v1204 = vadd.f32 %v31, %v1203
  %1205 = vmatmul.bf16.gmra.mxu0 %v1136
  %v1206 = vpop.f32.mrf.mxu0
  %v1207 = vadd.f32 %v31, %v1206
  %v1208 = vpop.f32.mrf.mxu0
  %v1209 = vadd.f32 %v31, %v1208
  %1210 = vmatmul.bf16.gmra.mxu0 %v1139
  %v1211 = vpop.f32.mrf.mxu0
  %v1212 = vadd.f32 %v31, %v1211
  %v1213 = vpop.f32.mrf.mxu0
  %v1214 = vadd.f32 %v31, %v1213
  %1215 = vmatmul.bf16.gmra.mxu0 %v1142
  %v1216 = vpop.f32.mrf.mxu0
  %v1217 = vadd.f32 %v31, %v1216
  %v1218 = vpop.f32.mrf.mxu0
  %v1219 = vadd.f32 %v31, %v1218
  %1220 = vmatmul.bf16.gmra.mxu0 %v1145
  %v1221 = vpop.f32.mrf.mxu0
  %v1222 = vadd.f32 %v31, %v1221
  %v1223 = vpop.f32.mrf.mxu0
  %v1224 = vadd.f32 %v31, %v1223
  %1225 = vmatmul.bf16.gmra.mxu0 %v1148
  %v1226 = vpop.f32.mrf.mxu0
  %v1227 = vadd.f32 %v31, %v1226
  %v1228 = vpop.f32.mrf.mxu0
  %v1229 = vadd.f32 %v31, %v1228
  %1230 = vmatmul.bf16.gmra.mxu0 %v1151
  %v1231 = vpop.f32.mrf.mxu0
  %v1232 = vadd.f32 %v31, %v1231
  %v1233 = vpop.f32.mrf.mxu0
  %v1234 = vadd.f32 %v31, %v1233
  %1235 = vmatmul.bf16.gmra.mxu0 %v1154
  %v1236 = vpop.f32.mrf.mxu0
  %v1237 = vadd.f32 %v31, %v1236
  %v1238 = vpop.f32.mrf.mxu0
  %v1239 = vadd.f32 %v31, %v1238
  %1240 = vmatmul.bf16.gmra.mxu0 %v1157
  %v1241 = vpop.f32.mrf.mxu0
  %v1242 = vadd.f32 %v31, %v1241
  %v1243 = vpop.f32.mrf.mxu0
  %v1244 = vadd.f32 %v31, %v1243
  %1245 = vmatmul.bf16.gmra.mxu0 %v1160
  %v1246 = vpop.f32.mrf.mxu0
  %v1247 = vadd.f32 %v31, %v1246
  %v1248 = vpop.f32.mrf.mxu0
  %v1249 = vadd.f32 %v31, %v1248
  %1250 = vdwg.mxu0
  %v1251 = vmax.f32 %v1172, 0.0
  %v1252 = vmax.f32 %v1174, 0.0
  %v1253 = vmax.f32 %v1177, 0.0
  %v1254 = vmax.f32 %v1179, 0.0
  %v1255 = vmax.f32 %v1182, 0.0
  %v1256 = vmax.f32 %v1184, 0.0
  %v1257 = vmax.f32 %v1187, 0.0
  %v1258 = vmax.f32 %v1189, 0.0
  %v1259 = vmax.f32 %v1192, 0.0
  %v1260 = vmax.f32 %v1194, 0.0
  %v1261 = vmax.f32 %v1197, 0.0
  %v1262 = vmax.f32 %v1199, 0.0
  %v1263 = vmax.f32 %v1202, 0.0
  %v1264 = vmax.f32 %v1204, 0.0
  %v1265 = vmax.f32 %v1207, 0.0
  %v1266 = vmax.f32 %v1209, 0.0
  %v1267 = vmax.f32 %v1212, 0.0
  %v1268 = vmax.f32 %v1214, 0.0
  %v1269 = vmax.f32 %v1217, 0.0
  %v1270 = vmax.f32 %v1219, 0.0
  %v1271 = vmax.f32 %v1222, 0.0
  %v1272 = vmax.f32 %v1224, 0.0
  %v1273 = vmax.f32 %v1227, 0.0
  %v1274 = vmax.f32 %v1229, 0.0
  %v1275 = vmax.f32 %v1232, 0.0
  %v1276 = vmax.f32 %v1234, 0.0
  %v1277 = vmax.f32 %v1237, 0.0
  %v1278 = vmax.f32 %v1239, 0.0
  %v1279 = vmax.f32 %v1242, 0.0
  %v1280 = vmax.f32 %v1244, 0.0
  %v1281 = vmax.f32 %v1247, 0.0
  %v1282 = vmax.f32 %v1249, 0.0
  %v1283 = vadd.f32 %v1251, %v1252
  %v1284 = vadd.f32 %v1283, %v1253
  %v1285 = vadd.f32 %v1284, %v1254
  %v1286 = vadd.f32 %v1285, %v1255
  %v1287 = vadd.f32 %v1286, %v1256
  %v1288 = vadd.f32 %v1287, %v1257
  %v1289 = vadd.f32 %v1288, %v1258
  %v1290 = vadd.f32 %v1289, %v1259
  %v1291 = vadd.f32 %v1290, %v1260
  %v1292 = vadd.f32 %v1291, %v1261
  %v1293 = vadd.f32 %v1292, %v1262
  %v1294 = vadd.f32 %v1293, %v1263
  %v1295 = vadd.f32 %v1294, %v1264
  %v1296 = vadd.f32 %v1295, %v1265
  %v1297 = vadd.f32 %v1296, %v1266
  %v1298 = vadd.f32 %v1297, %v1267
  %v1299 = vadd.f32 %v1298, %v1268
  %v1300 = vadd.f32 %v1299, %v1269
  %v1301 = vadd.f32 %v1300, %v1270
  %v1302 = vadd.f32 %v1301, %v1271
  %v1303 = vadd.f32 %v1302, %v1272
  %v1304 = vadd.f32 %v1303, %v1273
  %v1305 = vadd.f32 %v1304, %v1274
  %v1306 = vadd.f32 %v1305, %v1275
  %v1307 = vadd.f32 %v1306, %v1276
  %v1308 = vadd.f32 %v1307, %v1277
  %v1309 = vadd.f32 %v1308, %v1278
  %v1310 = vadd.f32 %v1309, %v1279
  %v1311 = vadd.f32 %v1310, %v1280
  %v1312 = vadd.f32 %v1311, %v1281
  %v1313 = vadd.f32 %v1312, %v1282
  %v1314 = vrot.slane %v1313, 4
  %v1315 = vadd.f32 %v1313, %v1314
  %v1316 = vrot.slane %v1315, 2
  %v1317 = vadd.f32 %v1315, %v1316
  %v1318 = vrot.slane %v1317, 1
  %v1319 = vadd.f32 %v1317, %v1318
  %1320 = vst [vmem:[#allocation2 + $0x4] sm:$0x1] %v1319
  %s1321 = scalar_lea.vmem %s0, 160
  %v1322 = vld [vmem:[%s1321] sm:$0xff]
  %v1323 = vld [vmem:[%s1321 + $0x8] sm:$0xff]
  %v1324 = vld [vmem:[%s1321 + $0x10] sm:$0xff]
  %v1325 = vld [vmem:[%s1321 + $0x18] sm:$0xff]
  %v1330 = vunpack.c.l.b16 %v1322
  %v1331 = vunpack.c.h.b16 %v1322
  %v1332 = vunpack.c.l.b16 %v1323
  %v1333 = vunpack.c.h.b16 %v1323
  %v1334 = vunpack.c.l.b16 %v1324
  %v1335 = vunpack.c.h.b16 %v1324
  %v1336 = vunpack.c.l.b16 %v1325
  %v1337 = vunpack.c.h.b16 %v1325
  %v1338 = vpack.c.b16 %v1332, %v1330
  %v1339 = vpack.c.b16 %v1333, %v1331
  %v1340 = vpack.c.b16 %v1336, %v1334
  %v1341 = vpack.c.b16 %v1337, %v1335
  %1346 = vxpose.binary.xlu0.c.b16.start [1/16] %v1339, %v1338, 128
  %1347 = vxpose.binary.xlu0.c.b16.cont [2/16] %v1341, %v1340, 128
  %1348 = vxpose.binary.xlu0.c.b16.cont [3/16] 0, 0, 128
  %1349 = vxpose.binary.xlu0.c.b16.cont [4/16] 0, 0, 128
  %1350 = vxpose.binary.xlu0.c.b16.cont [5/16] 0, 0, 128
  %1351 = vxpose.binary.xlu0.c.b16.cont [6/16] 0, 0, 128
  %1352 = vxpose.binary.xlu0.c.b16.cont [7/16] 0, 0, 128
  %1353 = vxpose.binary.xlu0.c.b16.end [8/16] 0, 0, 128
  %v1354 = vpop.trf.xlu0
  %v1355 = vpop.trf.xlu0
  %v1356 = vpop.trf.xlu0
  %v1357 = vpop.trf.xlu0
  %v1358 = vpop.trf.xlu0
  %v1359 = vpop.trf.xlu0
  %v1360 = vpop.trf.xlu0
  %v1361 = vpop.trf.xlu0
  %v1362 = vpop.trf.xlu0
  %v1363 = vpop.trf.xlu0
  %v1364 = vpop.trf.xlu0
  %v1365 = vpop.trf.xlu0
  %v1366 = vpop.trf.xlu0
  %v1367 = vpop.trf.xlu0
  %v1368 = vpop.trf.xlu0
  %v1369 = vpop.trf.xlu0
  %v1371 = vsel %vm89, %v1354, 0
  %v1374 = vsel %vm89, %v1356, 0
  %v1377 = vsel %vm89, %v1358, 0
  %v1380 = vsel %vm89, %v1360, 0
  %v1383 = vsel %vm89, %v1362, 0
  %v1386 = vsel %vm89, %v1364, 0
  %v1389 = vsel %vm89, %v1366, 0
  %v1392 = vsel %vm89, %v1368, 0
  %v1395 = vsel %vm89, %v1355, 0
  %v1398 = vsel %vm89, %v1357, 0
  %v1401 = vsel %vm89, %v1359, 0
  %v1404 = vsel %vm89, %v1361, 0
  %v1407 = vsel %vm89, %v1363, 0
  %v1410 = vsel %vm89, %v1365, 0
  %v1413 = vsel %vm89, %v1367, 0
  %v1416 = vsel %vm89, %v1369, 0
  %1418 = vmatpush.bf16.msra.mxu0 0
  %1419 = vmatpush.bf16.msra.mxu0 0
  %1420 = vmatpush.bf16.msra.mxu0 0
  %1421 = vmatpush.bf16.msra.mxu0 0
  %1422 = vmatpush.bf16.msra.mxu0 0
  %1423 = vmatpush.bf16.msra.mxu0 0
  %1424 = vmatpush.bf16.msra.mxu0 %v86
  %1425 = vmatpush.bf16.msra.mxu0 %v85
  %1426 = vmatmul.bf16.gmra.mxu0 %v1371
  %v1427 = vpop.f32.mrf.mxu0
  %v1428 = vadd.f32 %v31, %v1427
  %v1429 = vpop.f32.mrf.mxu0
  %v1430 = vadd.f32 %v31, %v1429
  %1431 = vmatmul.bf16.gmra.mxu0 %v1374
  %v1432 = vpop.f32.mrf.mxu0
  %v1433 = vadd.f32 %v31, %v1432
  %v1434 = vpop.f32.mrf.mxu0
  %v1435 = vadd.f32 %v31, %v1434
  %1436 = vmatmul.bf16.gmra.mxu0 %v1377
  %v1437 = vpop.f32.mrf.mxu0
  %v1438 = vadd.f32 %v31, %v1437
  %v1439 = vpop.f32.mrf.mxu0
  %v1440 = vadd.f32 %v31, %v1439
  %1441 = vmatmul.bf16.gmra.mxu0 %v1380
  %v1442 = vpop.f32.mrf.mxu0
  %v1443 = vadd.f32 %v31, %v1442
  %v1444 = vpop.f32.mrf.mxu0
  %v1445 = vadd.f32 %v31, %v1444
  %1446 = vmatmul.bf16.gmra.mxu0 %v1383
  %v1447 = vpop.f32.mrf.mxu0
  %v1448 = vadd.f32 %v31, %v1447
  %v1449 = vpop.f32.mrf.mxu0
  %v1450 = vadd.f32 %v31, %v1449
  %1451 = vmatmul.bf16.gmra.mxu0 %v1386
  %v1452 = vpop.f32.mrf.mxu0
  %v1453 = vadd.f32 %v31, %v1452
  %v1454 = vpop.f32.mrf.mxu0
  %v1455 = vadd.f32 %v31, %v1454
  %1456 = vmatmul.bf16.gmra.mxu0 %v1389
  %v1457 = vpop.f32.mrf.mxu0
  %v1458 = vadd.f32 %v31, %v1457
  %v1459 = vpop.f32.mrf.mxu0
  %v1460 = vadd.f32 %v31, %v1459
  %1461 = vmatmul.bf16.gmra.mxu0 %v1392
  %v1462 = vpop.f32.mrf.mxu0
  %v1463 = vadd.f32 %v31, %v1462
  %v1464 = vpop.f32.mrf.mxu0
  %v1465 = vadd.f32 %v31, %v1464
  %1466 = vmatmul.bf16.gmra.mxu0 %v1395
  %v1467 = vpop.f32.mrf.mxu0
  %v1468 = vadd.f32 %v31, %v1467
  %v1469 = vpop.f32.mrf.mxu0
  %v1470 = vadd.f32 %v31, %v1469
  %1471 = vmatmul.bf16.gmra.mxu0 %v1398
  %v1472 = vpop.f32.mrf.mxu0
  %v1473 = vadd.f32 %v31, %v1472
  %v1474 = vpop.f32.mrf.mxu0
  %v1475 = vadd.f32 %v31, %v1474
  %1476 = vmatmul.bf16.gmra.mxu0 %v1401
  %v1477 = vpop.f32.mrf.mxu0
  %v1478 = vadd.f32 %v31, %v1477
  %v1479 = vpop.f32.mrf.mxu0
  %v1480 = vadd.f32 %v31, %v1479
  %1481 = vmatmul.bf16.gmra.mxu0 %v1404
  %v1482 = vpop.f32.mrf.mxu0
  %v1483 = vadd.f32 %v31, %v1482
  %v1484 = vpop.f32.mrf.mxu0
  %v1485 = vadd.f32 %v31, %v1484
  %1486 = vmatmul.bf16.gmra.mxu0 %v1407
  %v1487 = vpop.f32.mrf.mxu0
  %v1488 = vadd.f32 %v31, %v1487
  %v1489 = vpop.f32.mrf.mxu0
  %v1490 = vadd.f32 %v31, %v1489
  %1491 = vmatmul.bf16.gmra.mxu0 %v1410
  %v1492 = vpop.f32.mrf.mxu0
  %v1493 = vadd.f32 %v31, %v1492
  %v1494 = vpop.f32.mrf.mxu0
  %v1495 = vadd.f32 %v31, %v1494
  %1496 = vmatmul.bf16.gmra.mxu0 %v1413
  %v1497 = vpop.f32.mrf.mxu0
  %v1498 = vadd.f32 %v31, %v1497
  %v1499 = vpop.f32.mrf.mxu0
  %v1500 = vadd.f32 %v31, %v1499
  %1501 = vmatmul.bf16.gmra.mxu0 %v1416
  %v1502 = vpop.f32.mrf.mxu0
  %v1503 = vadd.f32 %v31, %v1502
  %v1504 = vpop.f32.mrf.mxu0
  %v1505 = vadd.f32 %v31, %v1504
  %1506 = vdwg.mxu0
  %v1507 = vmax.f32 %v1428, 0.0
  %v1508 = vmax.f32 %v1430, 0.0
  %v1509 = vmax.f32 %v1433, 0.0
  %v1510 = vmax.f32 %v1435, 0.0
  %v1511 = vmax.f32 %v1438, 0.0
  %v1512 = vmax.f32 %v1440, 0.0
  %v1513 = vmax.f32 %v1443, 0.0
  %v1514 = vmax.f32 %v1445, 0.0
  %v1515 = vmax.f32 %v1448, 0.0
  %v1516 = vmax.f32 %v1450, 0.0
  %v1517 = vmax.f32 %v1453, 0.0
  %v1518 = vmax.f32 %v1455, 0.0
  %v1519 = vmax.f32 %v1458, 0.0
  %v1520 = vmax.f32 %v1460, 0.0
  %v1521 = vmax.f32 %v1463, 0.0
  %v1522 = vmax.f32 %v1465, 0.0
  %v1523 = vmax.f32 %v1468, 0.0
  %v1524 = vmax.f32 %v1470, 0.0
  %v1525 = vmax.f32 %v1473, 0.0
  %v1526 = vmax.f32 %v1475, 0.0
  %v1527 = vmax.f32 %v1478, 0.0
  %v1528 = vmax.f32 %v1480, 0.0
  %v1529 = vmax.f32 %v1483, 0.0
  %v1530 = vmax.f32 %v1485, 0.0
  %v1531 = vmax.f32 %v1488, 0.0
  %v1532 = vmax.f32 %v1490, 0.0
  %v1533 = vmax.f32 %v1493, 0.0
  %v1534 = vmax.f32 %v1495, 0.0
  %v1535 = vmax.f32 %v1498, 0.0
  %v1536 = vmax.f32 %v1500, 0.0
  %v1537 = vmax.f32 %v1503, 0.0
  %v1538 = vmax.f32 %v1505, 0.0
  %v1539 = vadd.f32 %v1507, %v1508
  %v1540 = vadd.f32 %v1539, %v1509
  %v1541 = vadd.f32 %v1540, %v1510
  %v1542 = vadd.f32 %v1541, %v1511
  %v1543 = vadd.f32 %v1542, %v1512
  %v1544 = vadd.f32 %v1543, %v1513
  %v1545 = vadd.f32 %v1544, %v1514
  %v1546 = vadd.f32 %v1545, %v1515
  %v1547 = vadd.f32 %v1546, %v1516
  %v1548 = vadd.f32 %v1547, %v1517
  %v1549 = vadd.f32 %v1548, %v1518
  %v1550 = vadd.f32 %v1549, %v1519
  %v1551 = vadd.f32 %v1550, %v1520
  %v1552 = vadd.f32 %v1551, %v1521
  %v1553 = vadd.f32 %v1552, %v1522
  %v1554 = vadd.f32 %v1553, %v1523
  %v1555 = vadd.f32 %v1554, %v1524
  %v1556 = vadd.f32 %v1555, %v1525
  %v1557 = vadd.f32 %v1556, %v1526
  %v1558 = vadd.f32 %v1557, %v1527
  %v1559 = vadd.f32 %v1558, %v1528
  %v1560 = vadd.f32 %v1559, %v1529
  %v1561 = vadd.f32 %v1560, %v1530
  %v1562 = vadd.f32 %v1561, %v1531
  %v1563 = vadd.f32 %v1562, %v1532
  %v1564 = vadd.f32 %v1563, %v1533
  %v1565 = vadd.f32 %v1564, %v1534
  %v1566 = vadd.f32 %v1565, %v1535
  %v1567 = vadd.f32 %v1566, %v1536
  %v1568 = vadd.f32 %v1567, %v1537
  %v1569 = vadd.f32 %v1568, %v1538
  %v1570 = vrot.slane %v1569, 4
  %v1571 = vadd.f32 %v1569, %v1570
  %v1572 = vrot.slane %v1571, 2
  %v1573 = vadd.f32 %v1571, %v1572
  %v1574 = vrot.slane %v1573, 1
  %v1575 = vadd.f32 %v1573, %v1574
  %1576 = vst [vmem:[#allocation2 + $0x5] sm:$0x1] %v1575
  %s1577 = scalar_lea.vmem %s0, 192
  %v1578 = vld [vmem:[%s1577] sm:$0xff]
  %v1579 = vld [vmem:[%s1577 + $0x8] sm:$0xff]
  %v1580 = vld [vmem:[%s1577 + $0x10] sm:$0xff]
  %v1581 = vld [vmem:[%s1577 + $0x18] sm:$0xff]
  %v1586 = vunpack.c.l.b16 %v1578
  %v1587 = vunpack.c.h.b16 %v1578
  %v1588 = vunpack.c.l.b16 %v1579
  %v1589 = vunpack.c.h.b16 %v1579
  %v1590 = vunpack.c.l.b16 %v1580
  %v1591 = vunpack.c.h.b16 %v1580
  %v1592 = vunpack.c.l.b16 %v1581
  %v1593 = vunpack.c.h.b16 %v1581
  %v1594 = vpack.c.b16 %v1588, %v1586
  %v1595 = vpack.c.b16 %v1589, %v1587
  %v1596 = vpack.c.b16 %v1592, %v1590
  %v1597 = vpack.c.b16 %v1593, %v1591
  %1602 = vxpose.binary.xlu0.c.b16.start [1/16] %v1595, %v1594, 128
  %1603 = vxpose.binary.xlu0.c.b16.cont [2/16] %v1597, %v1596, 128
  %1604 = vxpose.binary.xlu0.c.b16.cont [3/16] 0, 0, 128
  %1605 = vxpose.binary.xlu0.c.b16.cont [4/16] 0, 0, 128
  %1606 = vxpose.binary.xlu0.c.b16.cont [5/16] 0, 0, 128
  %1607 = vxpose.binary.xlu0.c.b16.cont [6/16] 0, 0, 128
  %1608 = vxpose.binary.xlu0.c.b16.cont [7/16] 0, 0, 128
  %1609 = vxpose.binary.xlu0.c.b16.end [8/16] 0, 0, 128
  %v1610 = vpop.trf.xlu0
  %v1611 = vpop.trf.xlu0
  %v1612 = vpop.trf.xlu0
  %v1613 = vpop.trf.xlu0
  %v1614 = vpop.trf.xlu0
  %v1615 = vpop.trf.xlu0
  %v1616 = vpop.trf.xlu0
  %v1617 = vpop.trf.xlu0
  %v1618 = vpop.trf.xlu0
  %v1619 = vpop.trf.xlu0
  %v1620 = vpop.trf.xlu0
  %v1621 = vpop.trf.xlu0
  %v1622 = vpop.trf.xlu0
  %v1623 = vpop.trf.xlu0
  %v1624 = vpop.trf.xlu0
  %v1625 = vpop.trf.xlu0
  %v1627 = vsel %vm89, %v1610, 0
  %v1630 = vsel %vm89, %v1612, 0
  %v1633 = vsel %vm89, %v1614, 0
  %v1636 = vsel %vm89, %v1616, 0
  %v1639 = vsel %vm89, %v1618, 0
  %v1642 = vsel %vm89, %v1620, 0
  %v1645 = vsel %vm89, %v1622, 0
  %v1648 = vsel %vm89, %v1624, 0
  %v1651 = vsel %vm89, %v1611, 0
  %v1654 = vsel %vm89, %v1613, 0
  %v1657 = vsel %vm89, %v1615, 0
  %v1660 = vsel %vm89, %v1617, 0
  %v1663 = vsel %vm89, %v1619, 0
  %v1666 = vsel %vm89, %v1621, 0
  %v1669 = vsel %vm89, %v1623, 0
  %v1672 = vsel %vm89, %v1625, 0
  %1674 = vmatpush.bf16.msra.mxu0 0
  %1675 = vmatpush.bf16.msra.mxu0 0
  %1676 = vmatpush.bf16.msra.mxu0 0
  %1677 = vmatpush.bf16.msra.mxu0 0
  %1678 = vmatpush.bf16.msra.mxu0 0
  %1679 = vmatpush.bf16.msra.mxu0 0
  %1680 = vmatpush.bf16.msra.mxu0 %v86
  %1681 = vmatpush.bf16.msra.mxu0 %v85
  %1682 = vmatmul.bf16.gmra.mxu0 %v1627
  %v1683 = vpop.f32.mrf.mxu0
  %v1684 = vadd.f32 %v31, %v1683
  %v1685 = vpop.f32.mrf.mxu0
  %v1686 = vadd.f32 %v31, %v1685
  %1687 = vmatmul.bf16.gmra.mxu0 %v1630
  %v1688 = vpop.f32.mrf.mxu0
  %v1689 = vadd.f32 %v31, %v1688
  %v1690 = vpop.f32.mrf.mxu0
  %v1691 = vadd.f32 %v31, %v1690
  %1692 = vmatmul.bf16.gmra.mxu0 %v1633
  %v1693 = vpop.f32.mrf.mxu0
  %v1694 = vadd.f32 %v31, %v1693
  %v1695 = vpop.f32.mrf.mxu0
  %v1696 = vadd.f32 %v31, %v1695
  %1697 = vmatmul.bf16.gmra.mxu0 %v1636
  %v1698 = vpop.f32.mrf.mxu0
  %v1699 = vadd.f32 %v31, %v1698
  %v1700 = vpop.f32.mrf.mxu0
  %v1701 = vadd.f32 %v31, %v1700
  %1702 = vmatmul.bf16.gmra.mxu0 %v1639
  %v1703 = vpop.f32.mrf.mxu0
  %v1704 = vadd.f32 %v31, %v1703
  %v1705 = vpop.f32.mrf.mxu0
  %v1706 = vadd.f32 %v31, %v1705
  %1707 = vmatmul.bf16.gmra.mxu0 %v1642
  %v1708 = vpop.f32.mrf.mxu0
  %v1709 = vadd.f32 %v31, %v1708
  %v1710 = vpop.f32.mrf.mxu0
  %v1711 = vadd.f32 %v31, %v1710
  %1712 = vmatmul.bf16.gmra.mxu0 %v1645
  %v1713 = vpop.f32.mrf.mxu0
  %v1714 = vadd.f32 %v31, %v1713
  %v1715 = vpop.f32.mrf.mxu0
  %v1716 = vadd.f32 %v31, %v1715
  %1717 = vmatmul.bf16.gmra.mxu0 %v1648
  %v1718 = vpop.f32.mrf.mxu0
  %v1719 = vadd.f32 %v31, %v1718
  %v1720 = vpop.f32.mrf.mxu0
  %v1721 = vadd.f32 %v31, %v1720
  %1722 = vmatmul.bf16.gmra.mxu0 %v1651
  %v1723 = vpop.f32.mrf.mxu0
  %v1724 = vadd.f32 %v31, %v1723
  %v1725 = vpop.f32.mrf.mxu0
  %v1726 = vadd.f32 %v31, %v1725
  %1727 = vmatmul.bf16.gmra.mxu0 %v1654
  %v1728 = vpop.f32.mrf.mxu0
  %v1729 = vadd.f32 %v31, %v1728
  %v1730 = vpop.f32.mrf.mxu0
  %v1731 = vadd.f32 %v31, %v1730
  %1732 = vmatmul.bf16.gmra.mxu0 %v1657
  %v1733 = vpop.f32.mrf.mxu0
  %v1734 = vadd.f32 %v31, %v1733
  %v1735 = vpop.f32.mrf.mxu0
  %v1736 = vadd.f32 %v31, %v1735
  %1737 = vmatmul.bf16.gmra.mxu0 %v1660
  %v1738 = vpop.f32.mrf.mxu0
  %v1739 = vadd.f32 %v31, %v1738
  %v1740 = vpop.f32.mrf.mxu0
  %v1741 = vadd.f32 %v31, %v1740
  %1742 = vmatmul.bf16.gmra.mxu0 %v1663
  %v1743 = vpop.f32.mrf.mxu0
  %v1744 = vadd.f32 %v31, %v1743
  %v1745 = vpop.f32.mrf.mxu0
  %v1746 = vadd.f32 %v31, %v1745
  %1747 = vmatmul.bf16.gmra.mxu0 %v1666
  %v1748 = vpop.f32.mrf.mxu0
  %v1749 = vadd.f32 %v31, %v1748
  %v1750 = vpop.f32.mrf.mxu0
  %v1751 = vadd.f32 %v31, %v1750
  %1752 = vmatmul.bf16.gmra.mxu0 %v1669
  %v1753 = vpop.f32.mrf.mxu0
  %v1754 = vadd.f32 %v31, %v1753
  %v1755 = vpop.f32.mrf.mxu0
  %v1756 = vadd.f32 %v31, %v1755
  %1757 = vmatmul.bf16.gmra.mxu0 %v1672
  %v1758 = vpop.f32.mrf.mxu0
  %v1759 = vadd.f32 %v31, %v1758
  %v1760 = vpop.f32.mrf.mxu0
  %v1761 = vadd.f32 %v31, %v1760
  %1762 = vdwg.mxu0
  %v1763 = vmax.f32 %v1684, 0.0
  %v1764 = vmax.f32 %v1686, 0.0
  %v1765 = vmax.f32 %v1689, 0.0
  %v1766 = vmax.f32 %v1691, 0.0
  %v1767 = vmax.f32 %v1694, 0.0
  %v1768 = vmax.f32 %v1696, 0.0
  %v1769 = vmax.f32 %v1699, 0.0
  %v1770 = vmax.f32 %v1701, 0.0
  %v1771 = vmax.f32 %v1704, 0.0
  %v1772 = vmax.f32 %v1706, 0.0
  %v1773 = vmax.f32 %v1709, 0.0
  %v1774 = vmax.f32 %v1711, 0.0
  %v1775 = vmax.f32 %v1714, 0.0
  %v1776 = vmax.f32 %v1716, 0.0
  %v1777 = vmax.f32 %v1719, 0.0
  %v1778 = vmax.f32 %v1721, 0.0
  %v1779 = vmax.f32 %v1724, 0.0
  %v1780 = vmax.f32 %v1726, 0.0
  %v1781 = vmax.f32 %v1729, 0.0
  %v1782 = vmax.f32 %v1731, 0.0
  %v1783 = vmax.f32 %v1734, 0.0
  %v1784 = vmax.f32 %v1736, 0.0
  %v1785 = vmax.f32 %v1739, 0.0
  %v1786 = vmax.f32 %v1741, 0.0
  %v1787 = vmax.f32 %v1744, 0.0
  %v1788 = vmax.f32 %v1746, 0.0
  %v1789 = vmax.f32 %v1749, 0.0
  %v1790 = vmax.f32 %v1751, 0.0
  %v1791 = vmax.f32 %v1754, 0.0
  %v1792 = vmax.f32 %v1756, 0.0
  %v1793 = vmax.f32 %v1759, 0.0
  %v1794 = vmax.f32 %v1761, 0.0
  %v1795 = vadd.f32 %v1763, %v1764
  %v1796 = vadd.f32 %v1795, %v1765
  %v1797 = vadd.f32 %v1796, %v1766
  %v1798 = vadd.f32 %v1797, %v1767
  %v1799 = vadd.f32 %v1798, %v1768
  %v1800 = vadd.f32 %v1799, %v1769
  %v1801 = vadd.f32 %v1800, %v1770
  %v1802 = vadd.f32 %v1801, %v1771
  %v1803 = vadd.f32 %v1802, %v1772
  %v1804 = vadd.f32 %v1803, %v1773
  %v1805 = vadd.f32 %v1804, %v1774
  %v1806 = vadd.f32 %v1805, %v1775
  %v1807 = vadd.f32 %v1806, %v1776
  %v1808 = vadd.f32 %v1807, %v1777
  %v1809 = vadd.f32 %v1808, %v1778
  %v1810 = vadd.f32 %v1809, %v1779
  %v1811 = vadd.f32 %v1810, %v1780
  %v1812 = vadd.f32 %v1811, %v1781
  %v1813 = vadd.f32 %v1812, %v1782
  %v1814 = vadd.f32 %v1813, %v1783
  %v1815 = vadd.f32 %v1814, %v1784
  %v1816 = vadd.f32 %v1815, %v1785
  %v1817 = vadd.f32 %v1816, %v1786
  %v1818 = vadd.f32 %v1817, %v1787
  %v1819 = vadd.f32 %v1818, %v1788
  %v1820 = vadd.f32 %v1819, %v1789
  %v1821 = vadd.f32 %v1820, %v1790
  %v1822 = vadd.f32 %v1821, %v1791
  %v1823 = vadd.f32 %v1822, %v1792
  %v1824 = vadd.f32 %v1823, %v1793
  %v1825 = vadd.f32 %v1824, %v1794
  %v1826 = vrot.slane %v1825, 4
  %v1827 = vadd.f32 %v1825, %v1826
  %v1828 = vrot.slane %v1827, 2
  %v1829 = vadd.f32 %v1827, %v1828
  %v1830 = vrot.slane %v1829, 1
  %v1831 = vadd.f32 %v1829, %v1830
  %1832 = vst [vmem:[#allocation2 + $0x6] sm:$0x1] %v1831
  %s1833 = scalar_lea.vmem %s0, 224
  %v1834 = vld [vmem:[%s1833] sm:$0xff]
  %v1835 = vld [vmem:[%s1833 + $0x8] sm:$0xff]
  %v1836 = vld [vmem:[%s1833 + $0x10] sm:$0xff]
  %v1837 = vld [vmem:[%s1833 + $0x18] sm:$0xff]
  %v1842 = vunpack.c.l.b16 %v1834
  %v1843 = vunpack.c.h.b16 %v1834
  %v1844 = vunpack.c.l.b16 %v1835
  %v1845 = vunpack.c.h.b16 %v1835
  %v1846 = vunpack.c.l.b16 %v1836
  %v1847 = vunpack.c.h.b16 %v1836
  %v1848 = vunpack.c.l.b16 %v1837
  %v1849 = vunpack.c.h.b16 %v1837
  %v1850 = vpack.c.b16 %v1844, %v1842
  %v1851 = vpack.c.b16 %v1845, %v1843
  %v1852 = vpack.c.b16 %v1848, %v1846
  %v1853 = vpack.c.b16 %v1849, %v1847
  %1858 = vxpose.binary.xlu0.c.b16.start [1/16] %v1851, %v1850, 128
  %1859 = vxpose.binary.xlu0.c.b16.cont [2/16] %v1853, %v1852, 128
  %1860 = vxpose.binary.xlu0.c.b16.cont [3/16] 0, 0, 128
  %1861 = vxpose.binary.xlu0.c.b16.cont [4/16] 0, 0, 128
  %1862 = vxpose.binary.xlu0.c.b16.cont [5/16] 0, 0, 128
  %1863 = vxpose.binary.xlu0.c.b16.cont [6/16] 0, 0, 128
  %1864 = vxpose.binary.xlu0.c.b16.cont [7/16] 0, 0, 128
  %1865 = vxpose.binary.xlu0.c.b16.end [8/16] 0, 0, 128
  %v1866 = vpop.trf.xlu0
  %v1867 = vpop.trf.xlu0
  %v1868 = vpop.trf.xlu0
  %v1869 = vpop.trf.xlu0
  %v1870 = vpop.trf.xlu0
  %v1871 = vpop.trf.xlu0
  %v1872 = vpop.trf.xlu0
  %v1873 = vpop.trf.xlu0
  %v1874 = vpop.trf.xlu0
  %v1875 = vpop.trf.xlu0
  %v1876 = vpop.trf.xlu0
  %v1877 = vpop.trf.xlu0
  %v1878 = vpop.trf.xlu0
  %v1879 = vpop.trf.xlu0
  %v1880 = vpop.trf.xlu0
  %v1881 = vpop.trf.xlu0
  %v1883 = vsel %vm89, %v1866, 0
  %v1886 = vsel %vm89, %v1868, 0
  %v1889 = vsel %vm89, %v1870, 0
  %v1892 = vsel %vm89, %v1872, 0
  %v1895 = vsel %vm89, %v1874, 0
  %v1898 = vsel %vm89, %v1876, 0
  %v1901 = vsel %vm89, %v1878, 0
  %v1904 = vsel %vm89, %v1880, 0
  %v1907 = vsel %vm89, %v1867, 0
  %v1910 = vsel %vm89, %v1869, 0
  %v1913 = vsel %vm89, %v1871, 0
  %v1916 = vsel %vm89, %v1873, 0
  %v1919 = vsel %vm89, %v1875, 0
  %v1922 = vsel %vm89, %v1877, 0
  %v1925 = vsel %vm89, %v1879, 0
  %v1928 = vsel %vm89, %v1881, 0
  %1930 = vmatpush.bf16.msra.mxu0 0
  %1931 = vmatpush.bf16.msra.mxu0 0
  %1932 = vmatpush.bf16.msra.mxu0 0
  %1933 = vmatpush.bf16.msra.mxu0 0
  %1934 = vmatpush.bf16.msra.mxu0 0
  %1935 = vmatpush.bf16.msra.mxu0 0
  %1936 = vmatpush.bf16.msra.mxu0 %v86
  %1937 = vmatpush.bf16.msra.mxu0 %v85
  %1938 = vmatmul.bf16.gmra.mxu0 %v1883
  %v1939 = vpop.f32.mrf.mxu0
  %v1940 = vadd.f32 %v31, %v1939
  %v1941 = vpop.f32.mrf.mxu0
  %v1942 = vadd.f32 %v31, %v1941
  %1943 = vmatmul.bf16.gmra.mxu0 %v1886
  %v1944 = vpop.f32.mrf.mxu0
  %v1945 = vadd.f32 %v31, %v1944
  %v1946 = vpop.f32.mrf.mxu0
  %v1947 = vadd.f32 %v31, %v1946
  %1948 = vmatmul.bf16.gmra.mxu0 %v1889
  %v1949 = vpop.f32.mrf.mxu0
  %v1950 = vadd.f32 %v31, %v1949
  %v1951 = vpop.f32.mrf.mxu0
  %v1952 = vadd.f32 %v31, %v1951
  %1953 = vmatmul.bf16.gmra.mxu0 %v1892
  %v1954 = vpop.f32.mrf.mxu0
  %v1955 = vadd.f32 %v31, %v1954
  %v1956 = vpop.f32.mrf.mxu0
  %v1957 = vadd.f32 %v31, %v1956
  %1958 = vmatmul.bf16.gmra.mxu0 %v1895
  %v1959 = vpop.f32.mrf.mxu0
  %v1960 = vadd.f32 %v31, %v1959
  %v1961 = vpop.f32.mrf.mxu0
  %v1962 = vadd.f32 %v31, %v1961
  %1963 = vmatmul.bf16.gmra.mxu0 %v1898
  %v1964 = vpop.f32.mrf.mxu0
  %v1965 = vadd.f32 %v31, %v1964
  %v1966 = vpop.f32.mrf.mxu0
  %v1967 = vadd.f32 %v31, %v1966
  %1968 = vmatmul.bf16.gmra.mxu0 %v1901
  %v1969 = vpop.f32.mrf.mxu0
  %v1970 = vadd.f32 %v31, %v1969
  %v1971 = vpop.f32.mrf.mxu0
  %v1972 = vadd.f32 %v31, %v1971
  %1973 = vmatmul.bf16.gmra.mxu0 %v1904
  %v1974 = vpop.f32.mrf.mxu0
  %v1975 = vadd.f32 %v31, %v1974
  %v1976 = vpop.f32.mrf.mxu0
  %v1977 = vadd.f32 %v31, %v1976
  %1978 = vmatmul.bf16.gmra.mxu0 %v1907
  %v1979 = vpop.f32.mrf.mxu0
  %v1980 = vadd.f32 %v31, %v1979
  %v1981 = vpop.f32.mrf.mxu0
  %v1982 = vadd.f32 %v31, %v1981
  %1983 = vmatmul.bf16.gmra.mxu0 %v1910
  %v1984 = vpop.f32.mrf.mxu0
  %v1985 = vadd.f32 %v31, %v1984
  %v1986 = vpop.f32.mrf.mxu0
  %v1987 = vadd.f32 %v31, %v1986
  %1988 = vmatmul.bf16.gmra.mxu0 %v1913
  %v1989 = vpop.f32.mrf.mxu0
  %v1990 = vadd.f32 %v31, %v1989
  %v1991 = vpop.f32.mrf.mxu0
  %v1992 = vadd.f32 %v31, %v1991
  %1993 = vmatmul.bf16.gmra.mxu0 %v1916
  %v1994 = vpop.f32.mrf.mxu0
  %v1995 = vadd.f32 %v31, %v1994
  %v1996 = vpop.f32.mrf.mxu0
  %v1997 = vadd.f32 %v31, %v1996
  %1998 = vmatmul.bf16.gmra.mxu0 %v1919
  %v1999 = vpop.f32.mrf.mxu0
  %v2000 = vadd.f32 %v31, %v1999
  %v2001 = vpop.f32.mrf.mxu0
  %v2002 = vadd.f32 %v31, %v2001
  %2003 = vmatmul.bf16.gmra.mxu0 %v1922
  %v2004 = vpop.f32.mrf.mxu0
  %v2005 = vadd.f32 %v31, %v2004
  %v2006 = vpop.f32.mrf.mxu0
  %v2007 = vadd.f32 %v31, %v2006
  %2008 = vmatmul.bf16.gmra.mxu0 %v1925
  %v2009 = vpop.f32.mrf.mxu0
  %v2010 = vadd.f32 %v31, %v2009
  %v2011 = vpop.f32.mrf.mxu0
  %v2012 = vadd.f32 %v31, %v2011
  %2013 = vmatmul.bf16.gmra.mxu0 %v1928
  %v2014 = vpop.f32.mrf.mxu0
  %v2015 = vadd.f32 %v31, %v2014
  %v2016 = vpop.f32.mrf.mxu0
  %v2017 = vadd.f32 %v31, %v2016
  %2018 = vdwg.mxu0
  %v2019 = vmax.f32 %v1940, 0.0
  %v2020 = vmax.f32 %v1942, 0.0
  %v2021 = vmax.f32 %v1945, 0.0
  %v2022 = vmax.f32 %v1947, 0.0
  %v2023 = vmax.f32 %v1950, 0.0
  %v2024 = vmax.f32 %v1952, 0.0
  %v2025 = vmax.f32 %v1955, 0.0
  %v2026 = vmax.f32 %v1957, 0.0
  %v2027 = vmax.f32 %v1960, 0.0
  %v2028 = vmax.f32 %v1962, 0.0
  %v2029 = vmax.f32 %v1965, 0.0
  %v2030 = vmax.f32 %v1967, 0.0
  %v2031 = vmax.f32 %v1970, 0.0
  %v2032 = vmax.f32 %v1972, 0.0
  %v2033 = vmax.f32 %v1975, 0.0
  %v2034 = vmax.f32 %v1977, 0.0
  %v2035 = vmax.f32 %v1980, 0.0
  %v2036 = vmax.f32 %v1982, 0.0
  %v2037 = vmax.f32 %v1985, 0.0
  %v2038 = vmax.f32 %v1987, 0.0
  %v2039 = vmax.f32 %v1990, 0.0
  %v2040 = vmax.f32 %v1992, 0.0
  %v2041 = vmax.f32 %v1995, 0.0
  %v2042 = vmax.f32 %v1997, 0.0
  %v2043 = vmax.f32 %v2000, 0.0
  %v2044 = vmax.f32 %v2002, 0.0
  %v2045 = vmax.f32 %v2005, 0.0
  %v2046 = vmax.f32 %v2007, 0.0
  %v2047 = vmax.f32 %v2010, 0.0
  %v2048 = vmax.f32 %v2012, 0.0
  %v2049 = vmax.f32 %v2015, 0.0
  %v2050 = vmax.f32 %v2017, 0.0
  %v2051 = vadd.f32 %v2019, %v2020
  %v2052 = vadd.f32 %v2051, %v2021
  %v2053 = vadd.f32 %v2052, %v2022
  %v2054 = vadd.f32 %v2053, %v2023
  %v2055 = vadd.f32 %v2054, %v2024
  %v2056 = vadd.f32 %v2055, %v2025
  %v2057 = vadd.f32 %v2056, %v2026
  %v2058 = vadd.f32 %v2057, %v2027
  %v2059 = vadd.f32 %v2058, %v2028
  %v2060 = vadd.f32 %v2059, %v2029
  %v2061 = vadd.f32 %v2060, %v2030
  %v2062 = vadd.f32 %v2061, %v2031
  %v2063 = vadd.f32 %v2062, %v2032
  %v2064 = vadd.f32 %v2063, %v2033
  %v2065 = vadd.f32 %v2064, %v2034
  %v2066 = vadd.f32 %v2065, %v2035
  %v2067 = vadd.f32 %v2066, %v2036
  %v2068 = vadd.f32 %v2067, %v2037
  %v2069 = vadd.f32 %v2068, %v2038
  %v2070 = vadd.f32 %v2069, %v2039
  %v2071 = vadd.f32 %v2070, %v2040
  %v2072 = vadd.f32 %v2071, %v2041
  %v2073 = vadd.f32 %v2072, %v2042
  %v2074 = vadd.f32 %v2073, %v2043
  %v2075 = vadd.f32 %v2074, %v2044
  %v2076 = vadd.f32 %v2075, %v2045
  %v2077 = vadd.f32 %v2076, %v2046
  %v2078 = vadd.f32 %v2077, %v2047
  %v2079 = vadd.f32 %v2078, %v2048
  %v2080 = vadd.f32 %v2079, %v2049
  %v2081 = vadd.f32 %v2080, %v2050
  %v2082 = vrot.slane %v2081, 4
  %v2083 = vadd.f32 %v2081, %v2082
  %v2084 = vrot.slane %v2083, 2
  %v2085 = vadd.f32 %v2083, %v2084
  %v2086 = vrot.slane %v2085, 1
  %v2087 = vadd.f32 %v2085, %v2086
  %2088 = vst [vmem:[#allocation2 + $0x7] sm:$0x1] %v2087
  %v2089 = vld [vmem:[#allocation2] sm:$0xff]
  %v2090 = vpack.c.bf16 %v2089, %v2089
  %v2091 = vld [vmem:[%s3] sm:$0xf]
  %v2092 = vld [vmem:[%s3 + $0x4] sm:$0xf]
  %v2093 = vld [vmem:[%s3 + $0x8] sm:$0xf]
  %v2094 = vld [vmem:[%s3 + $0xc] sm:$0xf]
  %v2095 = vld [vmem:[%s3 + $0x10] sm:$0xf]
  %v2096 = vld [vmem:[%s3 + $0x14] sm:$0xf]
  %v2097 = vld [vmem:[%s3 + $0x18] sm:$0xf]
  %v2098 = vld [vmem:[%s3 + $0x1c] sm:$0xf]
  %v2099 = vld [vmem:[%s3 + $0x20] sm:$0xf]
  %v2100 = vld [vmem:[%s3 + $0x24] sm:$0xf]
  %v2101 = vld [vmem:[%s3 + $0x28] sm:$0xf]
  %v2102 = vld [vmem:[%s3 + $0x2c] sm:$0xf]
  %v2103 = vld [vmem:[%s3 + $0x30] sm:$0xf]
  %v2104 = vld [vmem:[%s3 + $0x34] sm:$0xf]
  %v2105 = vld [vmem:[%s3 + $0x38] sm:$0xf]
  %v2106 = vld [vmem:[%s3 + $0x3c] sm:$0xf]
  %v2107 = vld [vmem:[%s4] sm:$0x1]
  %v2109 = vperm.slane %v2107, 0
  %v2127 = vunpack.c.l.b16 %v2091
  %v2128 = vunpack.c.l.b16 %v2092
  %v2129 = vunpack.c.l.b16 %v2093
  %v2130 = vunpack.c.l.b16 %v2094
  %v2131 = vunpack.c.l.b16 %v2095
  %v2132 = vunpack.c.l.b16 %v2096
  %v2133 = vunpack.c.l.b16 %v2097
  %v2134 = vunpack.c.l.b16 %v2098
  %v2135 = vunpack.c.l.b16 %v2099
  %v2136 = vunpack.c.l.b16 %v2100
  %v2137 = vunpack.c.l.b16 %v2101
  %v2138 = vunpack.c.l.b16 %v2102
  %v2139 = vunpack.c.l.b16 %v2103
  %v2140 = vunpack.c.l.b16 %v2104
  %v2141 = vunpack.c.l.b16 %v2105
  %v2142 = vunpack.c.l.b16 %v2106
  %v2143 = vpack.c.b16 %v2128, %v2127
  %v2144 = vpack.c.b16 %v2130, %v2129
  %v2145 = vpack.c.b16 %v2132, %v2131
  %v2146 = vpack.c.b16 %v2134, %v2133
  %v2147 = vpack.c.b16 %v2136, %v2135
  %v2148 = vpack.c.b16 %v2138, %v2137
  %v2149 = vpack.c.b16 %v2140, %v2139
  %v2150 = vpack.c.b16 %v2142, %v2141
  %2159 = vmatpush.bf16.msra.mxu0 %v2150
  %2160 = vmatpush.bf16.msra.mxu0 %v2149
  %2161 = vmatpush.bf16.msra.mxu0 %v2148
  %2162 = vmatpush.bf16.msra.mxu0 %v2147
  %2163 = vmatpush.bf16.msra.mxu0 %v2146
  %2164 = vmatpush.bf16.msra.mxu0 %v2145
  %2165 = vmatpush.bf16.msra.mxu0 %v2144
  %2166 = vmatpush.bf16.msra.mxu0 %v2143
  %2167 = vmatmul.bf16.gmra.mxu0 %v2090
  %v2168 = vpop.f32.mrf.mxu0
  %v2169 = vadd.f32 %v2109, %v2168
  %v2170 = vpop.f32.mrf.mxu0
  %2171 = vdwg.mxu0
  %2172 = vst [vmem:[%s5] sm:$0xff] %v2169
  // Predicated region
  $region22: #{_annotate_jit.1} parent=0 // pred_check
    _
  $region23: #{_annotate_jit.1} parent=0 // pred_check_branch
    %2174 = sbr.rel (0) target = $region25
  $region24: #{_annotate_jit.1} parent=0 // pred_region
    _
  $region25: #{_annotate_jit.1} parent=0 // pred_fallthru
    _
  // Predicated region
  $region26: #{_annotate_jit.1} parent=0 // pred_check
    _
  $region27: #{_annotate_jit.1} parent=0 // pred_check_branch
    %2176 = sbr.rel (0) target = $region29
  $region28: #{_annotate_jit.1} parent=0 // pred_region
    _
  $region29: #{_annotate_jit.1} parent=0 // pred_fallthru
    _

</llo_original>
